<compile_context>
chip_gen: v6e
topology: v6e:2x2x1
jax: 0.10.0
libtpu: 0.0.40
codegen_flags: <defaults>
</compile_context>

<pallas_src>
import functools

import numpy as np
import jax
import jax.numpy as jnp
from jax.experimental import pallas as pl
from jax.experimental.pallas import tpu as pltpu


# ----------------------------------------------------------------------------
# Kernel 1: fused st_gcn block on a lane-dense (C, T*V) tile.
# ----------------------------------------------------------------------------
def stgcn_kernel(x_ref, A_ref, wg_ref, bg_ref, bn1b_ref, a1_ref,
                 wt_ref, bt_ref, wr_ref, br_ref, a2_ref, out_ref, *, V):
    x = x_ref[...]                                    # (C_in, T*V)
    TV = x.shape[1]
    C_out = wg_ref.shape[0]

    # gcn 1x1 conv (bn1 scale pre-folded into wg/bg) + block-diag graph matmul
    g = jnp.dot(wg_ref[...], x, preferred_element_type=jnp.float32) + bg_ref[...]
    g = jnp.dot(g, A_ref[...], preferred_element_type=jnp.float32)
    g = g + bn1b_ref[...]                             # bn1 shift (post-A, exact)
    a1 = a1_ref[...]
    h = jnp.maximum(g, 0.0) + a1 * jnp.minimum(g, 0.0)    # PReLU

    # temporal (3,1) conv, padding (1,0): time shift == lane shift by +/-V
    zpad = jnp.zeros((C_out, V), jnp.float32)
    h_prev = jnp.concatenate([zpad, h[:, :TV - V]], axis=1)   # h[t-1] (zero pad)
    h_next = jnp.concatenate([h[:, V:], zpad], axis=1)        # h[t+1] (zero pad)
    acc = jnp.dot(wt_ref[0], h_prev, preferred_element_type=jnp.float32)
    acc = acc + jnp.dot(wt_ref[1], h, preferred_element_type=jnp.float32)
    acc = acc + jnp.dot(wt_ref[2], h_next, preferred_element_type=jnp.float32)
    acc = acc + bt_ref[...]                           # bn2 folded into wt/bt

    # residual 1x1 conv (+ BN folded)
    r = jnp.dot(wr_ref[...], x, preferred_element_type=jnp.float32) + br_ref[...]
    y = acc + r
    a2 = a2_ref[...]
    out_ref[...] = jnp.maximum(y, 0.0) + a2 * jnp.minimum(y, 0.0)   # PReLU


def stgcn_pallas(params, x_stack, a_stack, V):
    B, C_in, TV = x_stack.shape
    C_out = params["w_gcn_f"].shape[0]

    def full(shape):
        zeros = (0,) * len(shape)
        return pl.BlockSpec(shape, lambda i: zeros)

    return pl.pallas_call(
        functools.partial(stgcn_kernel, V=V),
        out_shape=jax.ShapeDtypeStruct((B, C_out, TV), jnp.float32),
        grid=(B,),
        in_specs=[
            pl.BlockSpec((None, C_in, TV), lambda i: (i, 0, 0)),
            pl.BlockSpec((None, TV, TV), lambda i: (i, 0, 0)),
            full((C_out, C_in)), full((C_out, 1)), full((C_out, 1)),
            full((C_out, 1)),
            full((3, C_out, C_out)), full((C_out, 1)),
            full((C_out, C_in)), full((C_out, 1)), full((C_out, 1)),
        ],
        out_specs=pl.BlockSpec((None, C_out, TV), lambda i: (i, 0, 0)),
        compiler_params=pltpu.CompilerParams(
            dimension_semantics=("parallel",)),
    )(x_stack, a_stack,
      params["w_gcn_f"], params["b_gcn_f"], params["bn1_b"], params["a1_vec"],
      params["w_tcn_f"], params["b_tcn_f"],
      params["w_res_f"], params["b_res_f"], params["a2_vec"])


# ----------------------------------------------------------------------------
# Kernel 2: tpcnn0 (3x3 conv) + PReLU + tpcnn_out (3x3 conv) [+ adaptive pools]
# ----------------------------------------------------------------------------
def head_kernel(*refs, W, with_adaptive):
    if with_adaptive:
        (ximg_ref, masks_ref, w0_ref, b0_ref, a0_ref, w1_ref, b1_ref,
         vflat_ref, w1t_ref, w2t_ref, vout_ref, c_ref) = refs
    else:
        (ximg_ref, masks_ref, w0_ref, b0_ref, a0_ref, w1_ref, b1_ref,
         vout_ref) = refs

    mask_l = masks_ref[0:1, :]        # valid when dest w >= 1       (kw == 0)
    mask_r = masks_ref[1:2, :]        # valid when dest w <= W - 2   (kw == 2)

    def im2col3x3(x):                 # x: (C, H*W) -> (9*C, H*W)
        C, HW = x.shape
        blocks = []
        for kh in range(3):
            for kw in range(3):
                off = (kh - 1) * W + (kw - 1)
                if off > 0:
                    sh = jnp.concatenate(
                        [x[:, off:], jnp.zeros((C, off), jnp.float32)], axis=1)
                elif off < 0:
                    sh = jnp.concatenate(
                        [jnp.zeros((C, -off), jnp.float32), x[:, :HW + off]],
                        axis=1)
                else:
                    sh = x
                if kw == 0:
                    sh = sh * mask_l
                elif kw == 2:
                    sh = sh * mask_r
                blocks.append(sh)
        return jnp.concatenate(blocks, axis=0)

    # tpcnn0: single (C_out, 9*C_in) x (9*C_in, H*W) matmul, fused PReLU
    y0 = jnp.dot(w0_ref[...], im2col3x3(ximg_ref[...]),
                 preferred_element_type=jnp.float32) + b0_ref[...]
    a0 = a0_ref[...]
    y0 = jnp.maximum(y0, 0.0) + a0 * jnp.minimum(y0, 0.0)
    # tpcnn_out
    y1 = jnp.dot(w1_ref[...], im2col3x3(y0),
                 preferred_element_type=jnp.float32) + b1_ref[...]
    vout_ref[...] = y1                                # single lane-dense store

    if with_adaptive:
        w1t = w1t_ref[...]
        w2t = w2t_ref[...]
        outs = []
        for b in range(2):            # b=0: source (c_s), b=1: target (c_t)
            v = vflat_ref[b]          # (V, dv)
            hdn = jnp.tanh(jnp.dot(v, w1t, preferred_element_type=jnp.float32))
            s = jnp.dot(hdn, w2t, preferred_element_type=jnp.float32)   # (V, 1)
            s = s - jnp.max(s, axis=0, keepdims=True)
            e = jnp.exp(s)
            p = e / jnp.sum(e, axis=0, keepdims=True)                   # softmax over nodes
            outs.append(jnp.sum(p * v, axis=0, keepdims=True))          # (1, dv)
        c_ref[...] = jnp.concatenate(outs, axis=0)


def head_pallas(params, x_img, vflat, V):
    Tp = params["tpcnn0_b"].shape[0]
    HW = x_img.shape[1]
    dv = params["ada_w1t"].shape[0]
    with_adaptive = vflat is not None

    args = [x_img, params["conv_masks"],
            params["tpcnn0_w"], params["tpcnn0_b"], params["a0_vec"],
            params["tpcnn1_w"], params["tpcnn1_b"]]
    if with_adaptive:
        args += [vflat, params["ada_w1t"], params["ada_w2t"]]
        out_shape = (jax.ShapeDtypeStruct((Tp, HW), jnp.float32),
                     jax.ShapeDtypeStruct((2, dv), jnp.float32))
        out_specs = (pl.BlockSpec(memory_space=pltpu.MemorySpace.VMEM),
                     pl.BlockSpec(memory_space=pltpu.MemorySpace.VMEM))
    else:
        out_shape = jax.ShapeDtypeStruct((Tp, HW), jnp.float32)
        out_specs = pl.BlockSpec(memory_space=pltpu.MemorySpace.VMEM)

    return pl.pallas_call(
        functools.partial(head_kernel, W=V, with_adaptive=with_adaptive),
        out_shape=out_shape,
        in_specs=[pl.BlockSpec(memory_space=pltpu.MemorySpace.VMEM)
                  for _ in args],
        out_specs=out_specs,
    )(*args)


# ----------------------------------------------------------------------------
# Forward wrapper (layout plumbing only; all compute is in the two kernels)
# ----------------------------------------------------------------------------
def social_stgcnn_adaptive_forward(params, v_s, a_s, v_t=None, a_t=None):
    N, C_in, T, V = v_s.shape
    assert N == 1
    TV = T * V
    C_out = params["w_gcn_f"].shape[0]
    Tp = params["tpcnn0_b"].shape[0]

    def block_diag_adj(A):            # (T, V, V) -> (T*V, T*V) block diagonal
        eye = jnp.eye(T, dtype=A.dtype)
        return (eye[:, None, :, None] * A[:, :, None, :]).reshape(TV, TV)

    xs = v_s.reshape(C_in, TV)
    As = block_diag_adj(a_s)
    if v_t is not None:
        x_stack = jnp.stack([xs, v_t.reshape(C_in, TV)])
        a_stack = jnp.stack([As, block_diag_adj(a_t)])
    else:
        x_stack = xs[None]
        a_stack = As[None]

    v1 = stgcn_pallas(params, x_stack, a_stack, V)        # (B, C_out, T*V)
    vs1 = v1[0]

    # torch `.view(N, T, C, V)` on a contiguous tensor == flat reinterpret.
    x_img = vs1.reshape(T, C_out * V)                     # (T, H*W), H=C, W=V

    if v_t is None:
        y = head_pallas(params, x_img, None, V)           # (Tp, C_out*V)
        return y.reshape(1, C_out, Tp, V), None, None

    def node_major(v):                # (C, T*V) -> (V, C*T) == permute(0,3,1,2)
        return jnp.transpose(v.reshape(C_out, T, V), (2, 0, 1)).reshape(
            V, C_out * T)

    vflat = jnp.stack([node_major(vs1), node_major(v1[1])])    # (2, V, dv)
    y, c = head_pallas(params, x_img, vflat, V)
    v_out = y.reshape(1, C_out, Tp, V)        # torch `.view` back to (N,C,Tp,V)
    return v_out, c[0:1], c[1:2]


# ----------------------------------------------------------------------------
# Deterministic parameter initialization (BN folded, weights pre-laid-out)
# ----------------------------------------------------------------------------
def _bn_affine(gamma, beta, mean, var, eps=1e-5):
    scale = gamma / jnp.sqrt(var + eps)
    shift = beta - mean * scale
    return scale.reshape(-1, 1), shift.reshape(-1, 1)


def init_params(key, input_feat=2, output_feat=5, seq_len=8, pred_seq_len=12,
                num_nodes=16):
    ks = jax.random.split(key, 24)

    def nrm(k, shape, scale=0.1):
        return scale * jax.random.normal(k, shape, jnp.float32)

    C_in, C_out, T, Tp, V = input_feat, output_feat, seq_len, pred_seq_len, num_nodes
    dv = C_out * T

    # raw st_gcn parameters
    w_gcn, b_gcn = nrm(ks[0], (C_out, C_in)), nrm(ks[1], (C_out, 1))
    bn1_s, bn1_b = _bn_affine(1.0 + nrm(ks[2], (C_out,)), nrm(ks[3], (C_out,)),
                              nrm(ks[4], (C_out,)),
                              1.0 + jnp.abs(nrm(ks[5], (C_out,))))
    w_tcn4, b_tcn = nrm(ks[6], (C_out, C_out, 3, 1)), nrm(ks[7], (C_out, 1))
    bn2_s, bn2_b = _bn_affine(1.0 + nrm(ks[8], (C_out,)), nrm(ks[9], (C_out,)),
                              nrm(ks[10], (C_out,)),
                              1.0 + jnp.abs(nrm(ks[11], (C_out,))))
    w_res, b_res = nrm(ks[12], (C_out, C_in)), nrm(ks[13], (C_out, 1))
    bnr_s, bnr_b = _bn_affine(1.0 + nrm(ks[14], (C_out,)), nrm(ks[15], (C_out,)),
                              nrm(ks[16], (C_out,)),
                              1.0 + jnp.abs(nrm(ks[17], (C_out,))))
    w_tcn = jnp.transpose(w_tcn4[..., 0], (2, 0, 1))   # (3, C_out, C_out)

    # fold BN (eval mode).  bn1 scale folds exactly (row scaling commutes with
    # the right-multiplication by A); bn1 shift stays as a post-A add.
    w_gcn_f = bn1_s * w_gcn
    b_gcn_f = bn1_s * b_gcn
    w_tcn_f = bn2_s[None] * w_tcn
    b_tcn_f = bn2_s * b_tcn + bn2_b
    w_res_f = bnr_s * w_res
    b_res_f = bnr_s * b_res + bnr_b

    # tpcnn weights pre-laid-out for im2col: (Co,Ci,3,3) -> (Co, 9*Ci), row
    # order (kh,kw)-major then input channel, matching the in-kernel col build.
    def im2col_w(w):
        co, ci = w.shape[0], w.shape[1]
        return jnp.transpose(w, (0, 2, 3, 1)).reshape(co, 9 * ci)

    tp0_w, tp0_b = nrm(ks[18], (Tp, T, 3, 3)), nrm(ks[19], (Tp,))
    tp1_w, tp1_b = nrm(ks[20], (Tp, Tp, 3, 3)), nrm(ks[21], (Tp,))

    w1 = nrm(ks[22], (dv, dv))        # Linear(dv, dv, bias=False).weight
    w2 = nrm(ks[23], (1, dv))         # Linear(dv, 1,  bias=False).weight

    # horizontal-boundary masks for the 3x3 conv on the (H=C_out, W=V) image
    wpos = np.arange(C_out * V) % V
    conv_masks = jnp.asarray(
        np.stack([(wpos >= 1), (wpos <= V - 2)]).astype(np.float32))   # (2, H*W)

    return dict(
        w_gcn_f=w_gcn_f, b_gcn_f=b_gcn_f, bn1_b=bn1_b,
        a1_vec=jnp.full((C_out, 1), 0.25, jnp.float32),
        w_tcn_f=w_tcn_f, b_tcn_f=b_tcn_f,
        w_res_f=w_res_f, b_res_f=b_res_f,
        a2_vec=jnp.full((C_out, 1), 0.25, jnp.float32),
        tpcnn0_w=im2col_w(tp0_w), tpcnn0_b=tp0_b.reshape(Tp, 1),
        a0_vec=jnp.full((Tp, 1), 0.25, jnp.float32),
        tpcnn1_w=im2col_w(tp1_w), tpcnn1_b=tp1_b.reshape(Tp, 1),
        ada_w1t=jnp.transpose(w1),    # (dv, dv) for x @ W1^T
        ada_w2t=jnp.transpose(w2),    # (dv, 1)  for x @ W2^T
        conv_masks=conv_masks,
    )


# ----------------------------------------------------------------------------
if __name__ == "__main__":
    key = jax.random.PRNGKey(0)
    kx = jax.random.split(key, 5)

    N, C_in, T, V = 1, 2, 8, 16    # batch, input_feat, seq_len, num graph nodes
    v_s = jax.random.normal(kx[0], (N, C_in, T, V), jnp.float32)
    a_s = jax.nn.softmax(jax.random.normal(kx[1], (T, V, V), jnp.float32), axis=-1)
    v_t = jax.random.normal(kx[2], (N, C_in, T, V), jnp.float32)
    a_t = jax.nn.softmax(jax.random.normal(kx[3], (T, V, V), jnp.float32), axis=-1)

    params = init_params(kx[4], input_feat=C_in, output_feat=5, seq_len=T,
                         pred_seq_len=12, num_nodes=V)

    fwd = jax.jit(social_stgcnn_adaptive_forward)
    v_out, c_s, c_t = fwd(params, v_s, a_s, v_t, a_t)
    jax.block_until_ready((v_out, c_s, c_t))

    assert v_out.shape == (1, 5, 12, 16)
    assert c_s.shape == (1, 40) and c_t.shape == (1, 40)
    print("KERNEL_OK")
</pallas_src>

<mosaic_0001>
module attributes {stable_mosaic.version = 11 : i64} {
  func.func @stgcn_kernel(%arg0: i32, %arg1: memref<1x2x128xf32, #tpu.memory_space<vmem>>, %arg2: memref<1x128x128xf32, #tpu.memory_space<vmem>>, %arg3: memref<5x2xf32, #tpu.memory_space<vmem>>, %arg4: memref<5x1xf32, #tpu.memory_space<vmem>>, %arg5: memref<5x1xf32, #tpu.memory_space<vmem>>, %arg6: memref<5x1xf32, #tpu.memory_space<vmem>>, %arg7: memref<3x5x5xf32, #tpu.memory_space<vmem>>, %arg8: memref<5x1xf32, #tpu.memory_space<vmem>>, %arg9: memref<5x2xf32, #tpu.memory_space<vmem>>, %arg10: memref<5x1xf32, #tpu.memory_space<vmem>>, %arg11: memref<5x1xf32, #tpu.memory_space<vmem>>, %arg12: memref<1x5x128xf32, #tpu.memory_space<vmem>>) attributes {dimension_semantics = [#tpu.dimension_semantics<parallel>], iteration_bounds = array<i64: 2>, scalar_prefetch = 0 : i64, scratch_operands = 0 : i64, tpu.core_type = #tpu.core_type<tc>, window_params = [{transform_indices = @transform_0, window_bounds = array<i64: 1, 2, 128>}, {transform_indices = @transform_1, window_bounds = array<i64: 1, 128, 128>}, {pipeline_mode = #tpu.pipeline_mode<synchronous>, transform_indices = @transform_2, window_bounds = array<i64: 5, 2>}, {pipeline_mode = #tpu.pipeline_mode<synchronous>, transform_indices = @transform_3, window_bounds = array<i64: 5, 1>}, {pipeline_mode = #tpu.pipeline_mode<synchronous>, transform_indices = @transform_4, window_bounds = array<i64: 5, 1>}, {pipeline_mode = #tpu.pipeline_mode<synchronous>, transform_indices = @transform_5, window_bounds = array<i64: 5, 1>}, {pipeline_mode = #tpu.pipeline_mode<synchronous>, transform_indices = @transform_6, window_bounds = array<i64: 3, 5, 5>}, {pipeline_mode = #tpu.pipeline_mode<synchronous>, transform_indices = @transform_7, window_bounds = array<i64: 5, 1>}, {pipeline_mode = #tpu.pipeline_mode<synchronous>, transform_indices = @transform_8, window_bounds = array<i64: 5, 2>}, {pipeline_mode = #tpu.pipeline_mode<synchronous>, transform_indices = @transform_9, window_bounds = array<i64: 5, 1>}, {pipeline_mode = #tpu.pipeline_mode<synchronous>, transform_indices = @transform_10, window_bounds = array<i64: 5, 1>}, {transform_indices = @transform_11, window_bounds = array<i64: 1, 5, 128>}]} {
    %c0 = arith.constant 0 : index
    %c0_0 = arith.constant 0 : index
    %c0_1 = arith.constant 0 : index
    %0 = vector.load %arg1[%c0, %c0_0, %c0_1] : memref<1x2x128xf32, #tpu.memory_space<vmem>>, vector<1x2x128xf32>
    %1 = vector.shape_cast %0 : vector<1x2x128xf32> to vector<2x128xf32>
    %c0_2 = arith.constant 0 : index
    %c0_3 = arith.constant 0 : index
    %2 = vector.load %arg3[%c0_2, %c0_3] : memref<5x2xf32, #tpu.memory_space<vmem>>, vector<5x2xf32>
    %cst = arith.constant dense<0.000000e+00> : vector<5x128xf32>
    %3 = tpu.matmul %2, %1, %cst {dimension_numbers = #tpu.dot_dimension_numbers<[1], [0], [0], [1], [0, 0, 1, 1], [], []>} : vector<5x2xf32>, vector<2x128xf32>, vector<5x128xf32> -> vector<5x128xf32>
    %c0_4 = arith.constant 0 : index
    %c0_5 = arith.constant 0 : index
    %4 = vector.load %arg4[%c0_4, %c0_5] : memref<5x1xf32, #tpu.memory_space<vmem>>, vector<5x1xf32>
    %5 = vector.broadcast %4 : vector<5x1xf32> to vector<5x128xf32>
    %6 = arith.addf %3, %5 : vector<5x128xf32>
    %c0_6 = arith.constant 0 : index
    %c0_7 = arith.constant 0 : index
    %c0_8 = arith.constant 0 : index
    %7 = vector.load %arg2[%c0_6, %c0_7, %c0_8] : memref<1x128x128xf32, #tpu.memory_space<vmem>>, vector<1x128x128xf32>
    %8 = vector.shape_cast %7 : vector<1x128x128xf32> to vector<128x128xf32>
    %cst_9 = arith.constant dense<0.000000e+00> : vector<5x128xf32>
    %9 = tpu.matmul %6, %8, %cst_9 {dimension_numbers = #tpu.dot_dimension_numbers<[1], [0], [0], [1], [0, 0, 1, 1], [], []>} : vector<5x128xf32>, vector<128x128xf32>, vector<5x128xf32> -> vector<5x128xf32>
    %c0_10 = arith.constant 0 : index
    %c0_11 = arith.constant 0 : index
    %10 = vector.load %arg5[%c0_10, %c0_11] : memref<5x1xf32, #tpu.memory_space<vmem>>, vector<5x1xf32>
    %11 = vector.broadcast %10 : vector<5x1xf32> to vector<5x128xf32>
    %12 = arith.addf %9, %11 : vector<5x128xf32>
    %c0_12 = arith.constant 0 : index
    %c0_13 = arith.constant 0 : index
    %13 = vector.load %arg6[%c0_12, %c0_13] : memref<5x1xf32, #tpu.memory_space<vmem>>, vector<5x1xf32>
    %cst_14 = arith.constant 0.000000e+00 : f32
    %14 = vector.broadcast %cst_14 : f32 to vector<5x128xf32>
    %15 = arith.maximumf %12, %14 : vector<5x128xf32>
    %cst_15 = arith.constant 0.000000e+00 : f32
    %16 = vector.broadcast %cst_15 : f32 to vector<5x128xf32>
    %17 = arith.minimumf %12, %16 : vector<5x128xf32>
    %18 = vector.broadcast %13 : vector<5x1xf32> to vector<5x128xf32>
    %19 = arith.mulf %18, %17 : vector<5x128xf32>
    %20 = arith.addf %15, %19 : vector<5x128xf32>
    %cst_16 = arith.constant 0.000000e+00 : f32
    %21 = vector.broadcast %cst_16 : f32 to vector<5x16xf32>
    %22 = vector.extract_strided_slice %20 {offsets = [0, 0], sizes = [5, 112], strides = [1, 1]} : vector<5x128xf32> to vector<5x112xf32>
    %23 = tpu.concatenate %21, %22 in 1 : vector<5x16xf32>, vector<5x112xf32> -> vector<5x128xf32>
    %24 = vector.extract_strided_slice %20 {offsets = [0, 16], sizes = [5, 112], strides = [1, 1]} : vector<5x128xf32> to vector<5x112xf32>
    %25 = tpu.concatenate %24, %21 in 1 : vector<5x112xf32>, vector<5x16xf32> -> vector<5x128xf32>
    %c0_17 = arith.constant 0 : index
    %c0_18 = arith.constant 0 : index
    %c0_19 = arith.constant 0 : index
    %26 = vector.load %arg7[%c0_17, %c0_18, %c0_19] : memref<3x5x5xf32, #tpu.memory_space<vmem>>, vector<1x5x5xf32>
    %27 = vector.shape_cast %26 : vector<1x5x5xf32> to vector<5x5xf32>
    %cst_20 = arith.constant dense<0.000000e+00> : vector<5x128xf32>
    %28 = tpu.matmul %27, %23, %cst_20 {dimension_numbers = #tpu.dot_dimension_numbers<[1], [0], [0], [1], [0, 0, 1, 1], [], []>} : vector<5x5xf32>, vector<5x128xf32>, vector<5x128xf32> -> vector<5x128xf32>
    %c1 = arith.constant 1 : index
    %c0_21 = arith.constant 0 : index
    %c0_22 = arith.constant 0 : index
    %29 = vector.load %arg7[%c1, %c0_21, %c0_22] : memref<3x5x5xf32, #tpu.memory_space<vmem>>, vector<1x5x5xf32>
    %30 = vector.shape_cast %29 : vector<1x5x5xf32> to vector<5x5xf32>
    %cst_23 = arith.constant dense<0.000000e+00> : vector<5x128xf32>
    %31 = tpu.matmul %30, %20, %cst_23 {dimension_numbers = #tpu.dot_dimension_numbers<[1], [0], [0], [1], [0, 0, 1, 1], [], []>} : vector<5x5xf32>, vector<5x128xf32>, vector<5x128xf32> -> vector<5x128xf32>
    %32 = arith.addf %28, %31 : vector<5x128xf32>
    %c2 = arith.constant 2 : index
    %c0_24 = arith.constant 0 : index
    %c0_25 = arith.constant 0 : index
    %33 = vector.load %arg7[%c2, %c0_24, %c0_25] : memref<3x5x5xf32, #tpu.memory_space<vmem>>, vector<1x5x5xf32>
    %34 = vector.shape_cast %33 : vector<1x5x5xf32> to vector<5x5xf32>
    %cst_26 = arith.constant dense<0.000000e+00> : vector<5x128xf32>
    %35 = tpu.matmul %34, %25, %cst_26 {dimension_numbers = #tpu.dot_dimension_numbers<[1], [0], [0], [1], [0, 0, 1, 1], [], []>} : vector<5x5xf32>, vector<5x128xf32>, vector<5x128xf32> -> vector<5x128xf32>
    %36 = arith.addf %32, %35 : vector<5x128xf32>
    %c0_27 = arith.constant 0 : index
    %c0_28 = arith.constant 0 : index
    %37 = vector.load %arg8[%c0_27, %c0_28] : memref<5x1xf32, #tpu.memory_space<vmem>>, vector<5x1xf32>
    %38 = vector.broadcast %37 : vector<5x1xf32> to vector<5x128xf32>
    %39 = arith.addf %36, %38 : vector<5x128xf32>
    %c0_29 = arith.constant 0 : index
    %c0_30 = arith.constant 0 : index
    %40 = vector.load %arg9[%c0_29, %c0_30] : memref<5x2xf32, #tpu.memory_space<vmem>>, vector<5x2xf32>
    %cst_31 = arith.constant dense<0.000000e+00> : vector<5x128xf32>
    %41 = tpu.matmul %40, %1, %cst_31 {dimension_numbers = #tpu.dot_dimension_numbers<[1], [0], [0], [1], [0, 0, 1, 1], [], []>} : vector<5x2xf32>, vector<2x128xf32>, vector<5x128xf32> -> vector<5x128xf32>
    %c0_32 = arith.constant 0 : index
    %c0_33 = arith.constant 0 : index
    %42 = vector.load %arg10[%c0_32, %c0_33] : memref<5x1xf32, #tpu.memory_space<vmem>>, vector<5x1xf32>
    %43 = vector.broadcast %42 : vector<5x1xf32> to vector<5x128xf32>
    %44 = arith.addf %41, %43 : vector<5x128xf32>
    %45 = arith.addf %39, %44 : vector<5x128xf32>
    %c0_34 = arith.constant 0 : index
    %c0_35 = arith.constant 0 : index
    %46 = vector.load %arg11[%c0_34, %c0_35] : memref<5x1xf32, #tpu.memory_space<vmem>>, vector<5x1xf32>
    %cst_36 = arith.constant 0.000000e+00 : f32
    %47 = vector.broadcast %cst_36 : f32 to vector<5x128xf32>
    %48 = arith.maximumf %45, %47 : vector<5x128xf32>
    %cst_37 = arith.constant 0.000000e+00 : f32
    %49 = vector.broadcast %cst_37 : f32 to vector<5x128xf32>
    %50 = arith.minimumf %45, %49 : vector<5x128xf32>
    %51 = vector.broadcast %46 : vector<5x1xf32> to vector<5x128xf32>
    %52 = arith.mulf %51, %50 : vector<5x128xf32>
    %53 = arith.addf %48, %52 : vector<5x128xf32>
    %c0_38 = arith.constant 0 : index
    %c0_39 = arith.constant 0 : index
    %c0_40 = arith.constant 0 : index
    %54 = vector.load %arg12[%c0_38, %c0_39, %c0_40] : memref<1x5x128xf32, #tpu.memory_space<vmem>>, vector<1x5x128xf32>
    %55 = vector.shape_cast %54 : vector<1x5x128xf32> to vector<5x128xf32>
    %56 = vector.shape_cast %53 : vector<5x128xf32> to vector<1x5x128xf32>
    tpu.vector_store %arg12[%c0_38, %c0_39, %c0_40], %56 {strides = array<i32>} : memref<1x5x128xf32, #tpu.memory_space<vmem>>, vector<1x5x128xf32>,
    return
  }
  func.func @transform_0(%arg0: i32) -> (i32, i32, i32) {
    %c0_i32 = arith.constant 0 : i32
    %c0_i32_0 = arith.constant 0 : i32
    %c0_i32_1 = arith.constant 0 : i32
    return %arg0, %c0_i32, %c0_i32_0 : i32, i32, i32
  }
  func.func @transform_1(%arg0: i32) -> (i32, i32, i32) {
    %c0_i32 = arith.constant 0 : i32
    %c0_i32_0 = arith.constant 0 : i32
    %c0_i32_1 = arith.constant 0 : i32
    return %arg0, %c0_i32, %c0_i32_0 : i32, i32, i32
  }
  func.func @transform_2(%arg0: i32) -> (i32, i32) {
    %c0_i32 = arith.constant 0 : i32
    %c0_i32_0 = arith.constant 0 : i32
    %c0_i32_1 = arith.constant 0 : i32
    return %c0_i32, %c0_i32_0 : i32, i32
  }
  func.func @transform_3(%arg0: i32) -> (i32, i32) {
    %c0_i32 = arith.constant 0 : i32
    %c0_i32_0 = arith.constant 0 : i32
    %c0_i32_1 = arith.constant 0 : i32
    return %c0_i32, %c0_i32_0 : i32, i32
  }
  func.func @transform_4(%arg0: i32) -> (i32, i32) {
    %c0_i32 = arith.constant 0 : i32
    %c0_i32_0 = arith.constant 0 : i32
    %c0_i32_1 = arith.constant 0 : i32
    return %c0_i32, %c0_i32_0 : i32, i32
  }
  func.func @transform_5(%arg0: i32) -> (i32, i32) {
    %c0_i32 = arith.constant 0 : i32
    %c0_i32_0 = arith.constant 0 : i32
    %c0_i32_1 = arith.constant 0 : i32
    return %c0_i32, %c0_i32_0 : i32, i32
  }
  func.func @transform_6(%arg0: i32) -> (i32, i32, i32) {
    %c0_i32 = arith.constant 0 : i32
    %c0_i32_0 = arith.constant 0 : i32
    %c0_i32_1 = arith.constant 0 : i32
    %c0_i32_2 = arith.constant 0 : i32
    return %c0_i32, %c0_i32_0, %c0_i32_1 : i32, i32, i32
  }
  func.func @transform_7(%arg0: i32) -> (i32, i32) {
    %c0_i32 = arith.constant 0 : i32
    %c0_i32_0 = arith.constant 0 : i32
    %c0_i32_1 = arith.constant 0 : i32
    return %c0_i32, %c0_i32_0 : i32, i32
  }
  func.func @transform_8(%arg0: i32) -> (i32, i32) {
    %c0_i32 = arith.constant 0 : i32
    %c0_i32_0 = arith.constant 0 : i32
    %c0_i32_1 = arith.constant 0 : i32
    return %c0_i32, %c0_i32_0 : i32, i32
  }
  func.func @transform_9(%arg0: i32) -> (i32, i32) {
    %c0_i32 = arith.constant 0 : i32
    %c0_i32_0 = arith.constant 0 : i32
    %c0_i32_1 = arith.constant 0 : i32
    return %c0_i32, %c0_i32_0 : i32, i32
  }
  func.func @transform_10(%arg0: i32) -> (i32, i32) {
    %c0_i32 = arith.constant 0 : i32
    %c0_i32_0 = arith.constant 0 : i32
    %c0_i32_1 = arith.constant 0 : i32
    return %c0_i32, %c0_i32_0 : i32, i32
  }
  func.func @transform_11(%arg0: i32) -> (i32, i32, i32) {
    %c0_i32 = arith.constant 0 : i32
    %c0_i32_0 = arith.constant 0 : i32
    %c0_i32_1 = arith.constant 0 : i32
    return %arg0, %c0_i32, %c0_i32_0 : i32, i32, i32
  }
}

module attributes {stable_mosaic.version = 11 : i64} {
  func.func @head_kernel(%arg0: memref<8x80xf32, #tpu.memory_space<vmem>>, %arg1: memref<2x80xf32, #tpu.memory_space<vmem>>, %arg2: memref<12x72xf32, #tpu.memory_space<vmem>>, %arg3: memref<12x1xf32, #tpu.memory_space<vmem>>, %arg4: memref<12x1xf32, #tpu.memory_space<vmem>>, %arg5: memref<12x108xf32, #tpu.memory_space<vmem>>, %arg6: memref<12x1xf32, #tpu.memory_space<vmem>>, %arg7: memref<2x16x40xf32, #tpu.memory_space<vmem>>, %arg8: memref<40x40xf32, #tpu.memory_space<vmem>>, %arg9: memref<40x1xf32, #tpu.memory_space<vmem>>, %arg10: memref<12x80xf32, #tpu.memory_space<vmem>>, %arg11: memref<2x40xf32, #tpu.memory_space<vmem>>) attributes {dimension_semantics = [], scalar_prefetch = 0 : i64, scratch_operands = 0 : i64, tpu.core_type = #tpu.core_type<tc>} {
    %c0 = arith.constant 0 : index
    %c0_0 = arith.constant 0 : index
    %0 = vector.load %arg1[%c0, %c0_0] : memref<2x80xf32, #tpu.memory_space<vmem>>, vector<1x80xf32>
    %c1 = arith.constant 1 : index
    %c0_1 = arith.constant 0 : index
    %1 = vector.load %arg1[%c1, %c0_1] : memref<2x80xf32, #tpu.memory_space<vmem>>, vector<1x80xf32>
    %c0_2 = arith.constant 0 : index
    %c0_3 = arith.constant 0 : index
    %2 = vector.load %arg2[%c0_2, %c0_3] : memref<12x72xf32, #tpu.memory_space<vmem>>, vector<12x72xf32>
    %c0_4 = arith.constant 0 : index
    %c0_5 = arith.constant 0 : index
    %3 = vector.load %arg0[%c0_4, %c0_5] : memref<8x80xf32, #tpu.memory_space<vmem>>, vector<8x80xf32>
    %cst = arith.constant 0.000000e+00 : f32
    %4 = vector.broadcast %cst : f32 to vector<8x17xf32>
    %5 = vector.extract_strided_slice %3 {offsets = [0, 0], sizes = [8, 63], strides = [1, 1]} : vector<8x80xf32> to vector<8x63xf32>
    %6 = tpu.concatenate %4, %5 in 1 : vector<8x17xf32>, vector<8x63xf32> -> vector<8x80xf32>
    %7 = vector.broadcast %0 : vector<1x80xf32> to vector<8x80xf32>
    %8 = arith.mulf %6, %7 : vector<8x80xf32>
    %cst_6 = arith.constant 0.000000e+00 : f32
    %9 = vector.broadcast %cst_6 : f32 to vector<8x16xf32>
    %10 = vector.extract_strided_slice %3 {offsets = [0, 0], sizes = [8, 64], strides = [1, 1]} : vector<8x80xf32> to vector<8x64xf32>
    %11 = tpu.concatenate %9, %10 in 1 : vector<8x16xf32>, vector<8x64xf32> -> vector<8x80xf32>
    %cst_7 = arith.constant 0.000000e+00 : f32
    %12 = vector.broadcast %cst_7 : f32 to vector<8x15xf32>
    %13 = vector.extract_strided_slice %3 {offsets = [0, 0], sizes = [8, 65], strides = [1, 1]} : vector<8x80xf32> to vector<8x65xf32>
    %14 = tpu.concatenate %12, %13 in 1 : vector<8x15xf32>, vector<8x65xf32> -> vector<8x80xf32>
    %15 = vector.broadcast %1 : vector<1x80xf32> to vector<8x80xf32>
    %16 = arith.mulf %14, %15 : vector<8x80xf32>
    %cst_8 = arith.constant 0.000000e+00 : f32
    %17 = vector.broadcast %cst_8 : f32 to vector<8x1xf32>
    %18 = vector.extract_strided_slice %3 {offsets = [0, 0], sizes = [8, 79], strides = [1, 1]} : vector<8x80xf32> to vector<8x79xf32>
    %19 = tpu.concatenate %17, %18 in 1 : vector<8x1xf32>, vector<8x79xf32> -> vector<8x80xf32>
    %20 = vector.broadcast %0 : vector<1x80xf32> to vector<8x80xf32>
    %21 = arith.mulf %19, %20 : vector<8x80xf32>
    %22 = vector.extract_strided_slice %3 {offsets = [0, 1], sizes = [8, 79], strides = [1, 1]} : vector<8x80xf32> to vector<8x79xf32>
    %cst_9 = arith.constant 0.000000e+00 : f32
    %23 = vector.broadcast %cst_9 : f32 to vector<8x1xf32>
    %24 = tpu.concatenate %22, %23 in 1 : vector<8x79xf32>, vector<8x1xf32> -> vector<8x80xf32>
    %25 = vector.broadcast %1 : vector<1x80xf32> to vector<8x80xf32>
    %26 = arith.mulf %24, %25 : vector<8x80xf32>
    %27 = vector.extract_strided_slice %3 {offsets = [0, 15], sizes = [8, 65], strides = [1, 1]} : vector<8x80xf32> to vector<8x65xf32>
    %cst_10 = arith.constant 0.000000e+00 : f32
    %28 = vector.broadcast %cst_10 : f32 to vector<8x15xf32>
    %29 = tpu.concatenate %27, %28 in 1 : vector<8x65xf32>, vector<8x15xf32> -> vector<8x80xf32>
    %30 = vector.broadcast %0 : vector<1x80xf32> to vector<8x80xf32>
    %31 = arith.mulf %29, %30 : vector<8x80xf32>
    %32 = vector.extract_strided_slice %3 {offsets = [0, 16], sizes = [8, 64], strides = [1, 1]} : vector<8x80xf32> to vector<8x64xf32>
    %cst_11 = arith.constant 0.000000e+00 : f32
    %33 = vector.broadcast %cst_11 : f32 to vector<8x16xf32>
    %34 = tpu.concatenate %32, %33 in 1 : vector<8x64xf32>, vector<8x16xf32> -> vector<8x80xf32>
    %35 = vector.extract_strided_slice %3 {offsets = [0, 17], sizes = [8, 63], strides = [1, 1]} : vector<8x80xf32> to vector<8x63xf32>
    %cst_12 = arith.constant 0.000000e+00 : f32
    %36 = vector.broadcast %cst_12 : f32 to vector<8x17xf32>
    %37 = tpu.concatenate %35, %36 in 1 : vector<8x63xf32>, vector<8x17xf32> -> vector<8x80xf32>
    %38 = vector.broadcast %1 : vector<1x80xf32> to vector<8x80xf32>
    %39 = arith.mulf %37, %38 : vector<8x80xf32>
    %40 = tpu.concatenate %8, %11, %16, %21, %3, %26, %31, %34, %39 in 0 : vector<8x80xf32>, vector<8x80xf32>, vector<8x80xf32>, vector<8x80xf32>, vector<8x80xf32>, vector<8x80xf32>, vector<8x80xf32>, vector<8x80xf32>, vector<8x80xf32> -> vector<72x80xf32>
    %cst_13 = arith.constant dense<0.000000e+00> : vector<12x80xf32>
    %41 = tpu.matmul %2, %40, %cst_13 {dimension_numbers = #tpu.dot_dimension_numbers<[1], [0], [0], [1], [0, 0, 1, 1], [], []>} : vector<12x72xf32>, vector<72x80xf32>, vector<12x80xf32> -> vector<12x80xf32>
    %c0_14 = arith.constant 0 : index
    %c0_15 = arith.constant 0 : index
    %42 = vector.load %arg3[%c0_14, %c0_15] : memref<12x1xf32, #tpu.memory_space<vmem>>, vector<12x1xf32>
    %43 = vector.broadcast %42 : vector<12x1xf32> to vector<12x80xf32>
    %44 = arith.addf %41, %43 : vector<12x80xf32>
    %c0_16 = arith.constant 0 : index
    %c0_17 = arith.constant 0 : index
    %45 = vector.load %arg4[%c0_16, %c0_17] : memref<12x1xf32, #tpu.memory_space<vmem>>, vector<12x1xf32>
    %cst_18 = arith.constant 0.000000e+00 : f32
    %46 = vector.broadcast %cst_18 : f32 to vector<12x80xf32>
    %47 = arith.maximumf %44, %46 : vector<12x80xf32>
    %cst_19 = arith.constant 0.000000e+00 : f32
    %48 = vector.broadcast %cst_19 : f32 to vector<12x80xf32>
    %49 = arith.minimumf %44, %48 : vector<12x80xf32>
    %50 = vector.broadcast %45 : vector<12x1xf32> to vector<12x80xf32>
    %51 = arith.mulf %50, %49 : vector<12x80xf32>
    %52 = arith.addf %47, %51 : vector<12x80xf32>
    %c0_20 = arith.constant 0 : index
    %c0_21 = arith.constant 0 : index
    %53 = vector.load %arg5[%c0_20, %c0_21] : memref<12x108xf32, #tpu.memory_space<vmem>>, vector<12x108xf32>
    %cst_22 = arith.constant 0.000000e+00 : f32
    %54 = vector.broadcast %cst_22 : f32 to vector<12x17xf32>
    %55 = vector.extract_strided_slice %52 {offsets = [0, 0], sizes = [12, 63], strides = [1, 1]} : vector<12x80xf32> to vector<12x63xf32>
    %56 = tpu.concatenate %54, %55 in 1 : vector<12x17xf32>, vector<12x63xf32> -> vector<12x80xf32>
    %57 = vector.broadcast %0 : vector<1x80xf32> to vector<12x80xf32>
    %58 = arith.mulf %56, %57 : vector<12x80xf32>
    %cst_23 = arith.constant 0.000000e+00 : f32
    %59 = vector.broadcast %cst_23 : f32 to vector<12x16xf32>
    %60 = vector.extract_strided_slice %52 {offsets = [0, 0], sizes = [12, 64], strides = [1, 1]} : vector<12x80xf32> to vector<12x64xf32>
    %61 = tpu.concatenate %59, %60 in 1 : vector<12x16xf32>, vector<12x64xf32> -> vector<12x80xf32>
    %cst_24 = arith.constant 0.000000e+00 : f32
    %62 = vector.broadcast %cst_24 : f32 to vector<12x15xf32>
    %63 = vector.extract_strided_slice %52 {offsets = [0, 0], sizes = [12, 65], strides = [1, 1]} : vector<12x80xf32> to vector<12x65xf32>
    %64 = tpu.concatenate %62, %63 in 1 : vector<12x15xf32>, vector<12x65xf32> -> vector<12x80xf32>
    %65 = vector.broadcast %1 : vector<1x80xf32> to vector<12x80xf32>
    %66 = arith.mulf %64, %65 : vector<12x80xf32>
    %cst_25 = arith.constant 0.000000e+00 : f32
    %67 = vector.broadcast %cst_25 : f32 to vector<12x1xf32>
    %68 = vector.extract_strided_slice %52 {offsets = [0, 0], sizes = [12, 79], strides = [1, 1]} : vector<12x80xf32> to vector<12x79xf32>
    %69 = tpu.concatenate %67, %68 in 1 : vector<12x1xf32>, vector<12x79xf32> -> vector<12x80xf32>
    %70 = vector.broadcast %0 : vector<1x80xf32> to vector<12x80xf32>
    %71 = arith.mulf %69, %70 : vector<12x80xf32>
    %72 = vector.extract_strided_slice %52 {offsets = [0, 1], sizes = [12, 79], strides = [1, 1]} : vector<12x80xf32> to vector<12x79xf32>
    %cst_26 = arith.constant 0.000000e+00 : f32
    %73 = vector.broadcast %cst_26 : f32 to vector<12x1xf32>
    %74 = tpu.concatenate %72, %73 in 1 : vector<12x79xf32>, vector<12x1xf32> -> vector<12x80xf32>
    %75 = vector.broadcast %1 : vector<1x80xf32> to vector<12x80xf32>
    %76 = arith.mulf %74, %75 : vector<12x80xf32>
    %77 = vector.extract_strided_slice %52 {offsets = [0, 15], sizes = [12, 65], strides = [1, 1]} : vector<12x80xf32> to vector<12x65xf32>
    %cst_27 = arith.constant 0.000000e+00 : f32
    %78 = vector.broadcast %cst_27 : f32 to vector<12x15xf32>
    %79 = tpu.concatenate %77, %78 in 1 : vector<12x65xf32>, vector<12x15xf32> -> vector<12x80xf32>
    %80 = vector.broadcast %0 : vector<1x80xf32> to vector<12x80xf32>
    %81 = arith.mulf %79, %80 : vector<12x80xf32>
    %82 = vector.extract_strided_slice %52 {offsets = [0, 16], sizes = [12, 64], strides = [1, 1]} : vector<12x80xf32> to vector<12x64xf32>
    %cst_28 = arith.constant 0.000000e+00 : f32
    %83 = vector.broadcast %cst_28 : f32 to vector<12x16xf32>
    %84 = tpu.concatenate %82, %83 in 1 : vector<12x64xf32>, vector<12x16xf32> -> vector<12x80xf32>
    %85 = vector.extract_strided_slice %52 {offsets = [0, 17], sizes = [12, 63], strides = [1, 1]} : vector<12x80xf32> to vector<12x63xf32>
    %cst_29 = arith.constant 0.000000e+00 : f32
    %86 = vector.broadcast %cst_29 : f32 to vector<12x17xf32>
    %87 = tpu.concatenate %85, %86 in 1 : vector<12x63xf32>, vector<12x17xf32> -> vector<12x80xf32>
    %88 = vector.broadcast %1 : vector<1x80xf32> to vector<12x80xf32>
    %89 = arith.mulf %87, %88 : vector<12x80xf32>
    %90 = tpu.concatenate %58, %61, %66, %71, %52, %76, %81, %84, %89 in 0 : vector<12x80xf32>, vector<12x80xf32>, vector<12x80xf32>, vector<12x80xf32>, vector<12x80xf32>, vector<12x80xf32>, vector<12x80xf32>, vector<12x80xf32>, vector<12x80xf32> -> vector<108x80xf32>
    %cst_30 = arith.constant dense<0.000000e+00> : vector<12x80xf32>
    %91 = tpu.matmul %53, %90, %cst_30 {dimension_numbers = #tpu.dot_dimension_numbers<[1], [0], [0], [1], [0, 0, 1, 1], [], []>} : vector<12x108xf32>, vector<108x80xf32>, vector<12x80xf32> -> vector<12x80xf32>
    %c0_31 = arith.constant 0 : index
    %c0_32 = arith.constant 0 : index
    %92 = vector.load %arg6[%c0_31, %c0_32] : memref<12x1xf32, #tpu.memory_space<vmem>>, vector<12x1xf32>
    %93 = vector.broadcast %92 : vector<12x1xf32> to vector<12x80xf32>
    %94 = arith.addf %91, %93 : vector<12x80xf32>
    %c0_33 = arith.constant 0 : index
    %c0_34 = arith.constant 0 : index
    %95 = vector.load %arg10[%c0_33, %c0_34] : memref<12x80xf32, #tpu.memory_space<vmem>>, vector<12x80xf32>
    tpu.vector_store %arg10[%c0_33, %c0_34], %94 {strides = array<i32>} : memref<12x80xf32, #tpu.memory_space<vmem>>, vector<12x80xf32>,
    %c0_35 = arith.constant 0 : index
    %c0_36 = arith.constant 0 : index
    %96 = vector.load %arg8[%c0_35, %c0_36] : memref<40x40xf32, #tpu.memory_space<vmem>>, vector<40x40xf32>
    %c0_37 = arith.constant 0 : index
    %c0_38 = arith.constant 0 : index
    %97 = vector.load %arg9[%c0_37, %c0_38] : memref<40x1xf32, #tpu.memory_space<vmem>>, vector<40x1xf32>
    %c0_39 = arith.constant 0 : index
    %c0_40 = arith.constant 0 : index
    %c0_41 = arith.constant 0 : index
    %98 = vector.load %arg7[%c0_39, %c0_40, %c0_41] : memref<2x16x40xf32, #tpu.memory_space<vmem>>, vector<1x16x40xf32>
    %99 = vector.shape_cast %98 : vector<1x16x40xf32> to vector<16x40xf32>
    %cst_42 = arith.constant dense<0.000000e+00> : vector<16x40xf32>
    %100 = tpu.matmul %99, %96, %cst_42 {dimension_numbers = #tpu.dot_dimension_numbers<[1], [0], [0], [1], [0, 0, 1, 1], [], []>} : vector<16x40xf32>, vector<40x40xf32>, vector<16x40xf32> -> vector<16x40xf32>
    %101 = math.tanh %100 : vector<16x40xf32>
    %cst_43 = arith.constant dense<0.000000e+00> : vector<16x1xf32>
    %102 = tpu.matmul %101, %97, %cst_43 {dimension_numbers = #tpu.dot_dimension_numbers<[1], [0], [0], [1], [0, 0, 1, 1], [], []>} : vector<16x40xf32>, vector<40x1xf32>, vector<16x1xf32> -> vector<16x1xf32>
    %cst_44 = arith.constant dense<0xFF800000> : vector<1xf32>
    %103 = vector.multi_reduction <maximumf>, %102, %cst_44 [0] : vector<16x1xf32> to vector<1xf32>
    %104 = vector.shape_cast %103 : vector<1xf32> to vector<1x1xf32>
    %105 = vector.broadcast %104 : vector<1x1xf32> to vector<16x1xf32>
    %106 = arith.subf %102, %105 : vector<16x1xf32>
    %107 = math.exp %106 : vector<16x1xf32>
    %cst_45 = arith.constant dense<0.000000e+00> : vector<1xf32>
    %108 = vector.multi_reduction <add>, %107, %cst_45 [0] : vector<16x1xf32> to vector<1xf32>
    %109 = vector.shape_cast %108 : vector<1xf32> to vector<1x1xf32>
    %110 = vector.broadcast %109 : vector<1x1xf32> to vector<16x1xf32>
    %111 = arith.divf %107, %110 : vector<16x1xf32>
    %112 = vector.broadcast %111 : vector<16x1xf32> to vector<16x40xf32>
    %113 = arith.mulf %112, %99 : vector<16x40xf32>
    %cst_46 = arith.constant dense<0.000000e+00> : vector<40xf32>
    %114 = vector.multi_reduction <add>, %113, %cst_46 [0] : vector<16x40xf32> to vector<40xf32>
    %115 = vector.shape_cast %114 : vector<40xf32> to vector<1x40xf32>
    %c1_47 = arith.constant 1 : index
    %c0_48 = arith.constant 0 : index
    %c0_49 = arith.constant 0 : index
    %116 = vector.load %arg7[%c1_47, %c0_48, %c0_49] : memref<2x16x40xf32, #tpu.memory_space<vmem>>, vector<1x16x40xf32>
    %117 = vector.shape_cast %116 : vector<1x16x40xf32> to vector<16x40xf32>
    %cst_50 = arith.constant dense<0.000000e+00> : vector<16x40xf32>
    %118 = tpu.matmul %117, %96, %cst_50 {dimension_numbers = #tpu.dot_dimension_numbers<[1], [0], [0], [1], [0, 0, 1, 1], [], []>} : vector<16x40xf32>, vector<40x40xf32>, vector<16x40xf32> -> vector<16x40xf32>
    %119 = math.tanh %118 : vector<16x40xf32>
    %cst_51 = arith.constant dense<0.000000e+00> : vector<16x1xf32>
    %120 = tpu.matmul %119, %97, %cst_51 {dimension_numbers = #tpu.dot_dimension_numbers<[1], [0], [0], [1], [0, 0, 1, 1], [], []>} : vector<16x40xf32>, vector<40x1xf32>, vector<16x1xf32> -> vector<16x1xf32>
    %cst_52 = arith.constant dense<0xFF800000> : vector<1xf32>
    %121 = vector.multi_reduction <maximumf>, %120, %cst_52 [0] : vector<16x1xf32> to vector<1xf32>
    %122 = vector.shape_cast %121 : vector<1xf32> to vector<1x1xf32>
    %123 = vector.broadcast %122 : vector<1x1xf32> to vector<16x1xf32>
    %124 = arith.subf %120, %123 : vector<16x1xf32>
    %125 = math.exp %124 : vector<16x1xf32>
    %cst_53 = arith.constant dense<0.000000e+00> : vector<1xf32>
    %126 = vector.multi_reduction <add>, %125, %cst_53 [0] : vector<16x1xf32> to vector<1xf32>
    %127 = vector.shape_cast %126 : vector<1xf32> to vector<1x1xf32>
    %128 = vector.broadcast %127 : vector<1x1xf32> to vector<16x1xf32>
    %129 = arith.divf %125, %128 : vector<16x1xf32>
    %130 = vector.broadcast %129 : vector<16x1xf32> to vector<16x40xf32>
    %131 = arith.mulf %130, %117 : vector<16x40xf32>
    %cst_54 = arith.constant dense<0.000000e+00> : vector<40xf32>
    %132 = vector.multi_reduction <add>, %131, %cst_54 [0] : vector<16x40xf32> to vector<40xf32>
    %133 = vector.shape_cast %132 : vector<40xf32> to vector<1x40xf32>
    %134 = tpu.concatenate %115, %133 in 0 : vector<1x40xf32>, vector<1x40xf32> -> vector<2x40xf32>
    %c0_55 = arith.constant 0 : index
    %c0_56 = arith.constant 0 : index
    %135 = vector.load %arg11[%c0_55, %c0_56] : memref<2x40xf32, #tpu.memory_space<vmem>>, vector<2x40xf32>
    tpu.vector_store %arg11[%c0_55, %c0_56], %134 {strides = array<i32>} : memref<2x40xf32, #tpu.memory_space<vmem>>, vector<2x40xf32>,
    return
  }
}

</mosaic_0001>

<llo_original>
// kernel: squeeze.4
$region0: #{squeeze.4}
  %s0 = inlined_call_operand.vmem [shape: f32[1,5,128], index: 0, kind: input, shape index: {}]
  %s1 = inlined_call_operand.vmem [shape: f32[5,8,16], index: 1, kind: output, shape index: {}]
  %v2 = vld [vmem:[%s0] sm:$0x1f]
  %vm3 = vcmask 130048
  %4 = vst.msk [vmem:[%s1] ss:$8 sm:$0xf] %vm3, %v2
  %s5 = scalar_lea.vmem %s1, 28
  %6 = vst.msk [vmem:[%s5] sm:$0x10] %vm3, %v2
  %v7 = vld [vmem:[%s0] sm:$0x1f]
  %8 = vrot.lane.b32.xlu0 %v7, 112
  %v9 = vpop.permute.xlu0 %8
  %vm10 = vcmask 130048
  %s11 = scalar_lea.vmem %s1, 1
  %12 = vst.msk [vmem:[%s11] ss:$8 sm:$0xf] %vm10, %v9
  %s13 = scalar_lea.vmem %s1, 29
  %14 = vst.msk [vmem:[%s13] sm:$0x10] %vm10, %v9
  %v15 = vld [vmem:[%s0] sm:$0x1f]
  %16 = vrot.lane.b32.xlu0 %v15, 96
  %v17 = vpop.permute.xlu0 %16
  %vm18 = vcmask 130048
  %s19 = scalar_lea.vmem %s1, 2
  %20 = vst.msk [vmem:[%s19] ss:$8 sm:$0xf] %vm18, %v17
  %s21 = scalar_lea.vmem %s1, 30
  %22 = vst.msk [vmem:[%s21] sm:$0x10] %vm18, %v17
  %v23 = vld [vmem:[%s0] sm:$0x1f]
  %24 = vrot.lane.b32.xlu0 %v23, 80
  %v25 = vpop.permute.xlu0 %24
  %vm26 = vcmask 130048
  %s27 = scalar_lea.vmem %s1, 3
  %28 = vst.msk [vmem:[%s27] ss:$8 sm:$0xf] %vm26, %v25
  %s29 = scalar_lea.vmem %s1, 31
  %30 = vst.msk [vmem:[%s29] sm:$0x10] %vm26, %v25
  %v31 = vld [vmem:[%s0] sm:$0x1f]
  %32 = vrot.lane.b32.xlu0 %v31, 64
  %v33 = vpop.permute.xlu0 %32
  %vm34 = vcmask 130048
  %s35 = scalar_lea.vmem %s1, 4
  %36 = vst.msk [vmem:[%s35] ss:$8 sm:$0xf] %vm34, %v33
  %s37 = scalar_lea.vmem %s1, 32
  %38 = vst.msk [vmem:[%s37] sm:$0x10] %vm34, %v33
  %v39 = vld [vmem:[%s0] sm:$0x1f]
  %40 = vrot.lane.b32.xlu0 %v39, 48
  %v41 = vpop.permute.xlu0 %40
  %vm42 = vcmask 130048
  %s43 = scalar_lea.vmem %s1, 5
  %44 = vst.msk [vmem:[%s43] ss:$8 sm:$0xf] %vm42, %v41
  %s45 = scalar_lea.vmem %s1, 33
  %46 = vst.msk [vmem:[%s45] sm:$0x10] %vm42, %v41
  %v47 = vld [vmem:[%s0] sm:$0x1f]
  %48 = vrot.lane.b32.xlu0 %v47, 32
  %v49 = vpop.permute.xlu0 %48
  %vm50 = vcmask 130048
  %s51 = scalar_lea.vmem %s1, 6
  %52 = vst.msk [vmem:[%s51] ss:$8 sm:$0xf] %vm50, %v49
  %s53 = scalar_lea.vmem %s1, 34
  %54 = vst.msk [vmem:[%s53] sm:$0x10] %vm50, %v49
  %v55 = vld [vmem:[%s0] sm:$0x1f]
  %56 = vrot.lane.b32.xlu0 %v55, 16
  %v57 = vpop.permute.xlu0 %56
  %vm58 = vcmask 130048
  %s59 = scalar_lea.vmem %s1, 7
  %60 = vst.msk [vmem:[%s59] ss:$8 sm:$0xf] %vm58, %v57
  %s61 = scalar_lea.vmem %s1, 35
  %62 = vst.msk [vmem:[%s61] sm:$0x10] %vm58, %v57

// kernel: squeeze.3
$region0: #{squeeze.3}
  %s0 = inlined_call_operand.vmem [shape: f32[1,5,128], index: 0, kind: input, shape index: {}]
  %s1 = inlined_call_operand.vmem [shape: f32[8,80], index: 1, kind: output, shape index: {}]
  %v2 = vld [vmem:[%s0] sm:$0x1]
  %vm3 = vcmask 654336
  %4 = vst.msk [vmem:[%s1] sm:$0x1] %vm3, %v2
  %s5 = scalar_lea.vmem %s0, 3
  %v6 = vld [vmem:[%s5] sm:$0x1]
  %7 = vrot.lane.b32.xlu0 %v6, 112
  %v8 = vpop.permute.xlu0 %7
  %vm9 = vcmask 654336
  %s10 = scalar_lea.vmem %s1, 5
  %11 = vst.msk [vmem:[%s10] sm:$0x1] %vm9, %v8
  %s12 = scalar_lea.vmem %s0, 1
  %v13 = vld [vmem:[%s12] sm:$0x1]
  %14 = vrot.lane.b32.xlu0 %v13, 96
  %v15 = vpop.permute.xlu0 %14
  %vm16 = vcmask 654336
  %s17 = scalar_lea.vmem %s1, 2
  %18 = vst.msk [vmem:[%s17] sm:$0x1] %vm16, %v15
  %s19 = scalar_lea.vmem %s0, 4
  %v20 = vld [vmem:[%s19] sm:$0x1]
  %21 = vrot.lane.b32.xlu0 %v20, 80
  %v22 = vpop.permute.xlu0 %21
  %vm23 = vcmask 654336
  %s24 = scalar_lea.vmem %s1, 7
  %25 = vst.msk [vmem:[%s24] sm:$0x1] %vm23, %v22
  %s26 = scalar_lea.vmem %s0, 2
  %v27 = vld [vmem:[%s26] sm:$0x1]
  %s28 = scalar_lea.vmem %s0, 3
  %v29 = vld [vmem:[%s28] sm:$0x1]
  %vm30 = vcmask 523264
  %v31 = vsel %vm30, %v29, %v27
  %32 = vrot.lane.b32.xlu0 %v31, 64
  %v33 = vpop.permute.xlu0 %32
  %vm34 = vcmask 523264
  %s35 = scalar_lea.vmem %s1, 4
  %36 = vst.msk [vmem:[%s35] sm:$0x1] %vm34, %v33
  %vm37 = vcmask 654848
  %s38 = scalar_lea.vmem %s1, 4
  %39 = vst.msk [vmem:[%s38] sm:$0x1] %vm37, %v33
  %v40 = vld [vmem:[%s0] sm:$0x1]
  %s41 = scalar_lea.vmem %s0, 1
  %v42 = vld [vmem:[%s41] sm:$0x1]
  %vm43 = vcmask 654336
  %v44 = vsel %vm43, %v42, %v40
  %45 = vrot.lane.b32.xlu0 %v44, 48
  %v46 = vpop.permute.xlu0 %45
  %vm47 = vcmask 392192
  %s48 = scalar_lea.vmem %s1, 1
  %49 = vst.msk [vmem:[%s48] sm:$0x1] %vm47, %v46
  %vm50 = vcmask 654720
  %s51 = scalar_lea.vmem %s1, 1
  %52 = vst.msk [vmem:[%s51] sm:$0x1] %vm50, %v46
  %s53 = scalar_lea.vmem %s0, 3
  %v54 = vld [vmem:[%s53] sm:$0x1]
  %s55 = scalar_lea.vmem %s0, 4
  %v56 = vld [vmem:[%s55] sm:$0x1]
  %vm57 = vcmask 785408
  %v58 = vsel %vm57, %v56, %v54
  %59 = vrot.lane.b32.xlu0 %v58, 32
  %v60 = vpop.permute.xlu0 %59
  %vm61 = vcmask 261120
  %s62 = scalar_lea.vmem %s1, 6
  %63 = vst.msk [vmem:[%s62] sm:$0x1] %vm61, %v60
  %vm64 = vcmask 654592
  %s65 = scalar_lea.vmem %s1, 6
  %66 = vst.msk [vmem:[%s65] sm:$0x1] %vm64, %v60
  %s67 = scalar_lea.vmem %s0, 1
  %v68 = vld [vmem:[%s67] sm:$0x1]
  %s69 = scalar_lea.vmem %s0, 2
  %v70 = vld [vmem:[%s69] sm:$0x1]
  %vm71 = vcmask 916480
  %v72 = vsel %vm71, %v70, %v68
  %73 = vrot.lane.b32.xlu0 %v72, 16
  %v74 = vpop.permute.xlu0 %73
  %vm75 = vcmask 130048
  %s76 = scalar_lea.vmem %s1, 3
  %77 = vst.msk [vmem:[%s76] sm:$0x1] %vm75, %v74
  %vm78 = vcmask 654464
  %s79 = scalar_lea.vmem %s1, 3
  %80 = vst.msk [vmem:[%s79] sm:$0x1] %vm78, %v74

// kernel: social_stgcnn_adaptive_forward.3
$region0: #{social_stgcnn_adaptive_forward.3}
  #allocation0 [shape = 'u32[]', space=smem, size = 0x4, offset = 0x4, fixed_abs, tag = 'smem constant byte address 0x4 - core index']
  #allocation1 [shape = 'u32[144,128]{1,0:T(1,128)}', space=vmem, size = 0x12000, scoped, tag = 'internal scratch']
  %s0 = inlined_call_operand.vmem [shape: f32[8,80], index: 0, kind: input, shape index: {}]
  %s1 = inlined_call_operand.vmem [shape: f32[2,80], index: 1, kind: input, shape index: {}]
  %s2 = inlined_call_operand.vmem [shape: f32[12,72], index: 2, kind: input, shape index: {}]
  %s3 = inlined_call_operand.vmem [shape: f32[12,1], index: 3, kind: input, shape index: {}]
  %s4 = inlined_call_operand.vmem [shape: f32[12,1], index: 4, kind: input, shape index: {}]
  %s5 = inlined_call_operand.vmem [shape: f32[12,108], index: 5, kind: input, shape index: {}]
  %s6 = inlined_call_operand.vmem [shape: f32[12,1], index: 6, kind: input, shape index: {}]
  %s7 = inlined_call_operand.vmem [shape: f32[2,16,40], index: 7, kind: input, shape index: {}]
  %s8 = inlined_call_operand.vmem [shape: f32[40,40], index: 8, kind: input, shape index: {}]
  %s9 = inlined_call_operand.vmem [shape: f32[40,1], index: 9, kind: input, shape index: {}]
  %s10 = inlined_call_operand.vmem [shape: f32[12,80], index: 10, kind: output, shape index: {0}]
  %s11 = inlined_call_operand.vmem [shape: f32[2,40], index: 11, kind: output, shape index: {1}]
  %12 = xla_tuple %s10, %s11
  %s13 = sld [smem:[#allocation0]]
  $region58: #{social_stgcnn_adaptive_forward.3} parent=0
    _
  %s15 = ssub.s32 1, %s13
  %s16 = scalar_select 0, %s15, %s13
  // Predicated region
  $region2: #{social_stgcnn_adaptive_forward.3} parent=0 // pred_check
    _
  $region3: #{social_stgcnn_adaptive_forward.3} parent=0 // pred_check_branch
    %18 = sbr.rel (0) target = $region5
  $region4: #{social_stgcnn_adaptive_forward.3} parent=0 // pred_region
    _
  $region5: #{social_stgcnn_adaptive_forward.3} parent=0 // pred_fallthru
    _
  // Predicated region
  $region6: #{social_stgcnn_adaptive_forward.3} parent=0 // pred_check
    _
  $region7: #{social_stgcnn_adaptive_forward.3} parent=0 // pred_check_branch
    %20 = sbr.rel (0) target = $region9
  $region8: #{social_stgcnn_adaptive_forward.3} parent=0 // pred_region
    _
  $region9: #{social_stgcnn_adaptive_forward.3} parent=0 // pred_fallthru
    _
  // Predicated region
  $region10: #{social_stgcnn_adaptive_forward.3} parent=0 // pred_check
    _
  $region11: #{social_stgcnn_adaptive_forward.3} parent=0 // pred_check_branch
    %22 = sbr.rel (0) target = $region13
  $region12: #{social_stgcnn_adaptive_forward.3} parent=0 // pred_region
    _
  $region13: #{social_stgcnn_adaptive_forward.3} parent=0 // pred_fallthru
    _
  // Predicated region
  $region14: #{social_stgcnn_adaptive_forward.3} parent=0 // pred_check
    _
  $region15: #{social_stgcnn_adaptive_forward.3} parent=0 // pred_check_branch
    %24 = sbr.rel (0) target = $region17
  $region16: #{social_stgcnn_adaptive_forward.3} parent=0 // pred_region
    _
  $region17: #{social_stgcnn_adaptive_forward.3} parent=0 // pred_fallthru
    _
  // Predicated region
  $region18: #{social_stgcnn_adaptive_forward.3} parent=0 // pred_check
    _
  $region19: #{social_stgcnn_adaptive_forward.3} parent=0 // pred_check_branch
    %26 = sbr.rel (0) target = $region21
  $region20: #{social_stgcnn_adaptive_forward.3} parent=0 // pred_region
    _
  $region21: #{social_stgcnn_adaptive_forward.3} parent=0 // pred_fallthru
    _
  // Predicated region
  $region22: #{social_stgcnn_adaptive_forward.3} parent=0 // pred_check
    _
  $region23: #{social_stgcnn_adaptive_forward.3} parent=0 // pred_check_branch
    %28 = sbr.rel (0) target = $region25
  $region24: #{social_stgcnn_adaptive_forward.3} parent=0 // pred_region
    _
  $region25: #{social_stgcnn_adaptive_forward.3} parent=0 // pred_fallthru
    _
  // Predicated region
  $region26: #{social_stgcnn_adaptive_forward.3} parent=0 // pred_check
    _
  $region27: #{social_stgcnn_adaptive_forward.3} parent=0 // pred_check_branch
    %30 = sbr.rel (0) target = $region29
  $region28: #{social_stgcnn_adaptive_forward.3} parent=0 // pred_region
    _
  $region29: #{social_stgcnn_adaptive_forward.3} parent=0 // pred_fallthru
    _
  // Predicated region
  $region30: #{social_stgcnn_adaptive_forward.3} parent=0 // pred_check
    _
  $region31: #{social_stgcnn_adaptive_forward.3} parent=0 // pred_check_branch
    %32 = sbr.rel (0) target = $region33
  $region32: #{social_stgcnn_adaptive_forward.3} parent=0 // pred_region
    _
  $region33: #{social_stgcnn_adaptive_forward.3} parent=0 // pred_fallthru
    _
  // Predicated region
  $region34: #{social_stgcnn_adaptive_forward.3} parent=0 // pred_check
    _
  $region35: #{social_stgcnn_adaptive_forward.3} parent=0 // pred_check_branch
    %34 = sbr.rel (0) target = $region37
  $region36: #{social_stgcnn_adaptive_forward.3} parent=0 // pred_region
    _
  $region37: #{social_stgcnn_adaptive_forward.3} parent=0 // pred_fallthru
    _
  // Predicated region
  $region38: #{social_stgcnn_adaptive_forward.3} parent=0 // pred_check
    _
  $region39: #{social_stgcnn_adaptive_forward.3} parent=0 // pred_check_branch
    %36 = sbr.rel (0) target = $region41
  $region40: #{social_stgcnn_adaptive_forward.3} parent=0 // pred_region
    _
  $region41: #{social_stgcnn_adaptive_forward.3} parent=0 // pred_fallthru
    _
  %v37 = vld [vmem:[%s1] sm:$0x1]
  %v38 = vld [vmem:[%s1 + $0x1] sm:$0x1]
  %v39 = vld [vmem:[%s2] sm:$0xff]
  %v40 = vld [vmem:[%s2 + $0x8] sm:$0xf]
  %v41 = vld [vmem:[%s0] sm:$0xff]
  %43 = vrot.lane.b32.xlu0 %v41, 17
  %v44 = vpop.permute.xlu0 %43
  %vm46 = vcmask 138240
  %v47 = vsel %vm46, 0.0, %v44
  %v48 = vlaneseq
  %v49 = vshrl.u32 %v48, 7
  %v50 = vsub.s32 0, %v49
  %v51 = vrot.slane %v37, %v50
  %v52 = vmul.f32 %v47, %v51
  %53 = vrot.lane.b32.xlu0 %v41, 16
  %v54 = vpop.permute.xlu0 %53
  %vm56 = vcmask 130048
  %v57 = vsel %vm56, 0.0, %v54
  %58 = vrot.lane.b32.xlu0 %v41, 15
  %v59 = vpop.permute.xlu0 %58
  %vm61 = vcmask 121856
  %v62 = vsel %vm61, 0.0, %v59
  %v63 = vlaneseq
  %v64 = vshrl.u32 %v63, 7
  %v65 = vsub.s32 0, %v64
  %v66 = vrot.slane %v38, %v65
  %v67 = vmul.f32 %v62, %v66
  %68 = vrot.lane.b32.xlu0 %v41, 1
  %v69 = vpop.permute.xlu0 %68
  %vm71 = vcmask 7168
  %v72 = vsel %vm71, 0.0, %v69
  %v73 = vmul.f32 %v72, %v51
  %74 = vrot.lane.b32.xlu0 %v41, 127
  %v75 = vpop.permute.xlu0 %74
  %vm77 = vcmask 646144
  %v78 = vsel %vm77, %v75, 0.0
  %v79 = vmul.f32 %v78, %v66
  %80 = vrot.lane.b32.xlu0 %v41, 113
  %v81 = vpop.permute.xlu0 %80
  %vm83 = vcmask 531456
  %v84 = vsel %vm83, %v81, 0.0
  %v85 = vmul.f32 %v84, %v51
  %86 = vrot.lane.b32.xlu0 %v41, 112
  %v87 = vpop.permute.xlu0 %86
  %vm89 = vcmask 523264
  %v90 = vsel %vm89, %v87, 0.0
  %91 = vrot.lane.b32.xlu0 %v41, 111
  %v92 = vpop.permute.xlu0 %91
  %vm94 = vcmask 515072
  %v95 = vsel %vm94, %v92, 0.0
  %v96 = vmul.f32 %v95, %v66
  %v97 = vld [vmem:[%s3] sm:$0xff]
  %v98 = vld [vmem:[%s3 + $0x8] sm:$0xf]
  %100 = vset.pattern.permute.xlu0 0
  %101 = vperm.xlu0 %100, %v97
  %v102 = vpop.permute.xlu0 %101
  %105 = vset.pattern.permute.xlu0 0
  %106 = vperm.xlu0 %105, %v98
  %v107 = vpop.permute.xlu0 %106
  %vm109 = vcmask 588800
  %v111 = vsel %vm109, %v39, 0
  %v114 = vsel %vm109, %v40, 0
  %116 = vmatprep.subr.mxu0 0.0
  %117 = vmatpush1.msra.mxu0 0.0
  %118 = vmatprep.subr.mxu0 0.0
  %119 = vmatpush1.msra.mxu0 0.0
  %120 = vmatprep.subr.mxu0 0.0
  %121 = vmatpush1.msra.mxu0 0.0
  %122 = vmatprep.subr.mxu0 0.0
  %123 = vmatpush1.msra.mxu0 0.0
  %124 = vmatprep.subr.mxu0 0.0
  %125 = vmatpush1.msra.mxu0 0.0
  %126 = vmatprep.subr.mxu0 0.0
  %127 = vmatpush1.msra.mxu0 0.0
  %128 = vmatprep.subr.mxu0 0.0
  %129 = vmatpush1.msra.mxu0 0.0
  %130 = vmatprep.subr.mxu0 0.0
  %131 = vmatpush1.msra.mxu0 %v96
  %132 = vmatprep.subr.mxu0 0.0
  %133 = vmatpush1.msra.mxu0 %v90
  %134 = vmatprep.subr.mxu0 0.0
  %135 = vmatpush1.msra.mxu0 %v85
  %136 = vmatprep.subr.mxu0 0.0
  %137 = vmatpush1.msra.mxu0 %v79
  %138 = vmatprep.subr.mxu0 0.0
  %139 = vmatpush1.msra.mxu0 %v41
  %140 = vmatprep.subr.mxu0 0.0
  %141 = vmatpush1.msra.mxu0 %v73
  %142 = vmatprep.subr.mxu0 0.0
  %143 = vmatpush1.msra.mxu0 %v67
  %144 = vmatprep.subr.mxu0 0.0
  %145 = vmatpush1.msra.mxu0 %v57
  %146 = vmatprep.subr.mxu0 0.0
  %147 = vmatpush1.msra.mxu0 %v52
  %148 = vmatprep.subr.mxu0 0.0
  %149 = vmatpush2.msra.mxu0 0.0
  %150 = vmatprep.subr.mxu0 0.0
  %151 = vmatpush2.msra.mxu0 0.0
  %152 = vmatprep.subr.mxu0 0.0
  %153 = vmatpush2.msra.mxu0 0.0
  %154 = vmatprep.subr.mxu0 0.0
  %155 = vmatpush2.msra.mxu0 0.0
  %156 = vmatprep.subr.mxu0 0.0
  %157 = vmatpush2.msra.mxu0 0.0
  %158 = vmatprep.subr.mxu0 0.0
  %159 = vmatpush2.msra.mxu0 0.0
  %160 = vmatprep.subr.mxu0 0.0
  %161 = vmatpush2.msra.mxu0 0.0
  %162 = vmatprep.subr.mxu0 0.0
  %163 = vmatpush2.msra.mxu0 0.0
  %164 = vmatprep.subr.mxu0 0.0
  %165 = vmatpush2.msra.mxu0 0.0
  %166 = vmatprep.subr.mxu0 0.0
  %167 = vmatpush2.msra.mxu0 0.0
  %168 = vmatprep.subr.mxu0 0.0
  %169 = vmatpush2.msra.mxu0 0.0
  %170 = vmatprep.subr.mxu0 0.0
  %171 = vmatpush2.msra.mxu0 0.0
  %172 = vmatprep.subr.mxu0 0.0
  %173 = vmatpush2.msra.mxu0 0.0
  %174 = vmatprep.subr.mxu0 0.0
  %175 = vmatpush2.msra.mxu0 0.0
  %176 = vmatprep.subr.mxu0 0.0
  %177 = vmatpush2.msra.mxu0 0.0
  %178 = vmatprep.subr.mxu0 0.0
  %179 = vmatpush2.msra.mxu0 0.0
  %180 = vmatprep.mubr.f32.mxu0 0.0
  %181 = vmatmul.mubr.f32.gmra.mxu0 %v111
  %v182 = vpop.f32.mrf.mxu0
  %v183 = vadd.f32 %v102, %v182
  %v184 = vpop.f32.mrf.mxu0
  %185 = vmatprep.mubr.f32.mxu0 0.0
  %186 = vmatmul.mubr.f32.gmra.mxu0 %v114
  %v187 = vpop.f32.mrf.mxu0
  %v188 = vadd.f32 %v107, %v187
  %v189 = vpop.f32.mrf.mxu0
  %190 = vdwg.mxu0
  %v191 = vld [vmem:[%s4] sm:$0xff]
  %v192 = vld [vmem:[%s4 + $0x8] sm:$0xf]
  %v193 = vmax.f32 %v183, 0.0
  %v194 = vmax.f32 %v188, 0.0
  %v195 = vmin.f32 %v183, 0.0
  %v196 = vmin.f32 %v188, 0.0
  %198 = vset.pattern.permute.xlu0 0
  %199 = vperm.xlu0 %198, %v191
  %v200 = vpop.permute.xlu0 %199
  %203 = vset.pattern.permute.xlu0 0
  %204 = vperm.xlu0 %203, %v192
  %v205 = vpop.permute.xlu0 %204
  %v207 = vmul.f32 %v200, %v195
  %v208 = vmul.f32 %v205, %v196
  %v209 = vadd.f32 %v193, %v207
  %v210 = vadd.f32 %v194, %v208
  %v211 = vld [vmem:[%s5] sm:$0xff]
  %v212 = vld [vmem:[%s5 + $0x8] sm:$0xf]
  %215 = vrot.lane.b32.xlu0 %v209, 17
  %v216 = vpop.permute.xlu0 %215
  %217 = vrot.lane.b32.xlu0 %v210, 17
  %v218 = vpop.permute.xlu0 %217
  %v221 = vsel %vm46, 0.0, %v216
  %v222 = vsel %vm46, 0.0, %v218
  %v223 = vmul.f32 %v221, %v51
  %v224 = vmul.f32 %v222, %v51
  %225 = vrot.lane.b32.xlu0 %v209, 16
  %v226 = vpop.permute.xlu0 %225
  %227 = vrot.lane.b32.xlu0 %v210, 16
  %v228 = vpop.permute.xlu0 %227
  %v231 = vsel %vm56, 0.0, %v226
  %v232 = vsel %vm56, 0.0, %v228
  %233 = vrot.lane.b32.xlu0 %v209, 15
  %v234 = vpop.permute.xlu0 %233
  %235 = vrot.lane.b32.xlu0 %v210, 15
  %v236 = vpop.permute.xlu0 %235
  %v239 = vsel %vm61, 0.0, %v234
  %v240 = vsel %vm61, 0.0, %v236
  %v241 = vmul.f32 %v239, %v66
  %v242 = vmul.f32 %v240, %v66
  %243 = vrot.lane.b32.xlu0 %v209, 1
  %v244 = vpop.permute.xlu0 %243
  %245 = vrot.lane.b32.xlu0 %v210, 1
  %v246 = vpop.permute.xlu0 %245
  %v249 = vsel %vm71, 0.0, %v244
  %v250 = vsel %vm71, 0.0, %v246
  %v251 = vmul.f32 %v249, %v51
  %v252 = vmul.f32 %v250, %v51
  %253 = vrot.lane.b32.xlu0 %v209, 127
  %v254 = vpop.permute.xlu0 %253
  %255 = vrot.lane.b32.xlu0 %v210, 127
  %v256 = vpop.permute.xlu0 %255
  %v259 = vsel %vm77, %v254, 0.0
  %v260 = vsel %vm77, %v256, 0.0
  %v261 = vmul.f32 %v259, %v66
  %v262 = vmul.f32 %v260, %v66
  %263 = vrot.lane.b32.xlu0 %v209, 113
  %v264 = vpop.permute.xlu0 %263
  %265 = vrot.lane.b32.xlu0 %v210, 113
  %v266 = vpop.permute.xlu0 %265
  %v269 = vsel %vm83, %v264, 0.0
  %v270 = vsel %vm83, %v266, 0.0
  %v271 = vmul.f32 %v269, %v51
  %v272 = vmul.f32 %v270, %v51
  %273 = vrot.lane.b32.xlu0 %v209, 112
  %v274 = vpop.permute.xlu0 %273
  %275 = vrot.lane.b32.xlu0 %v210, 112
  %v276 = vpop.permute.xlu0 %275
  %v279 = vsel %vm89, %v274, 0.0
  %v280 = vsel %vm89, %v276, 0.0
  %281 = vrot.lane.b32.xlu0 %v209, 111
  %v282 = vpop.permute.xlu0 %281
  %283 = vrot.lane.b32.xlu0 %v210, 111
  %v284 = vpop.permute.xlu0 %283
  %v287 = vsel %vm94, %v282, 0.0
  %v288 = vsel %vm94, %v284, 0.0
  %v289 = vmul.f32 %v287, %v66
  %v290 = vmul.f32 %v288, %v66
  %vm293 = vcmask 1043456
  %v294 = vrot.slane %v231, 4
  %v295 = vrot.slane %v232, 4
  %v296 = vsel %vm293, %v294, %v295
  %v301 = vrot.slane %v251, 4
  %v302 = vrot.slane %v252, 4
  %v303 = vsel %vm293, %v301, %v302
  %v308 = vrot.slane %v261, 4
  %v309 = vrot.slane %v262, 4
  %v310 = vsel %vm293, %v308, %v309
  %v315 = vrot.slane %v279, 4
  %v316 = vrot.slane %v280, 4
  %v317 = vsel %vm293, %v315, %v316
  %v320 = vsel %vm293, %v224, %v294
  %v321 = vsel %vm293, %v242, %v301
  %v322 = vsel %vm293, %v210, %v308
  %v323 = vsel %vm293, %v272, %v315
  %v324 = vld [vmem:[%s6] sm:$0xff]
  %v325 = vld [vmem:[%s6 + $0x8] sm:$0xf]
  %327 = vset.pattern.permute.xlu0 0
  %328 = vperm.xlu0 %327, %v324
  %v329 = vpop.permute.xlu0 %328
  %332 = vset.pattern.permute.xlu0 0
  %333 = vperm.xlu0 %332, %v325
  %v334 = vpop.permute.xlu0 %333
  %vm336 = vcmask 883712
  %v338 = vsel %vm336, %v211, 0
  %v341 = vsel %vm336, %v212, 0
  %v344 = vsel %vm293, %v290, 0
  %346 = vmatprep.subr.mxu0 0.0
  %347 = vmatpush1.msra.mxu0 0.0
  %348 = vmatprep.subr.mxu0 0.0
  %349 = vmatpush1.msra.mxu0 0.0
  %350 = vmatprep.subr.mxu0 0.0
  %351 = vmatpush1.msra.mxu0 %v344
  %352 = vmatprep.subr.mxu0 0.0
  %353 = vmatpush1.msra.mxu0 %v289
  %354 = vmatprep.subr.mxu0 0.0
  %355 = vmatpush1.msra.mxu0 %v317
  %356 = vmatprep.subr.mxu0 0.0
  %357 = vmatpush1.msra.mxu0 %v323
  %358 = vmatprep.subr.mxu0 0.0
  %359 = vmatpush1.msra.mxu0 %v271
  %360 = vmatprep.subr.mxu0 0.0
  %361 = vmatpush1.msra.mxu0 %v310
  %362 = vmatprep.subr.mxu0 0.0
  %363 = vmatpush1.msra.mxu0 %v322
  %364 = vmatprep.subr.mxu0 0.0
  %365 = vmatpush1.msra.mxu0 %v209
  %366 = vmatprep.subr.mxu0 0.0
  %367 = vmatpush1.msra.mxu0 %v303
  %368 = vmatprep.subr.mxu0 0.0
  %369 = vmatpush1.msra.mxu0 %v321
  %370 = vmatprep.subr.mxu0 0.0
  %371 = vmatpush1.msra.mxu0 %v241
  %372 = vmatprep.subr.mxu0 0.0
  %373 = vmatpush1.msra.mxu0 %v296
  %374 = vmatprep.subr.mxu0 0.0
  %375 = vmatpush1.msra.mxu0 %v320
  %376 = vmatprep.subr.mxu0 0.0
  %377 = vmatpush1.msra.mxu0 %v223
  %378 = vmatprep.subr.mxu0 0.0
  %379 = vmatpush2.msra.mxu0 0.0
  %380 = vmatprep.subr.mxu0 0.0
  %381 = vmatpush2.msra.mxu0 0.0
  %382 = vmatprep.subr.mxu0 0.0
  %383 = vmatpush2.msra.mxu0 0.0
  %384 = vmatprep.subr.mxu0 0.0
  %385 = vmatpush2.msra.mxu0 0.0
  %386 = vmatprep.subr.mxu0 0.0
  %387 = vmatpush2.msra.mxu0 0.0
  %388 = vmatprep.subr.mxu0 0.0
  %389 = vmatpush2.msra.mxu0 0.0
  %390 = vmatprep.subr.mxu0 0.0
  %391 = vmatpush2.msra.mxu0 0.0
  %392 = vmatprep.subr.mxu0 0.0
  %393 = vmatpush2.msra.mxu0 0.0
  %394 = vmatprep.subr.mxu0 0.0
  %395 = vmatpush2.msra.mxu0 0.0
  %396 = vmatprep.subr.mxu0 0.0
  %397 = vmatpush2.msra.mxu0 0.0
  %398 = vmatprep.subr.mxu0 0.0
  %399 = vmatpush2.msra.mxu0 0.0
  %400 = vmatprep.subr.mxu0 0.0
  %401 = vmatpush2.msra.mxu0 0.0
  %402 = vmatprep.subr.mxu0 0.0
  %403 = vmatpush2.msra.mxu0 0.0
  %404 = vmatprep.subr.mxu0 0.0
  %405 = vmatpush2.msra.mxu0 0.0
  %406 = vmatprep.subr.mxu0 0.0
  %407 = vmatpush2.msra.mxu0 0.0
  %408 = vmatprep.subr.mxu0 0.0
  %409 = vmatpush2.msra.mxu0 0.0
  %410 = vmatprep.mubr.f32.mxu0 0.0
  %411 = vmatmul.mubr.f32.gmra.mxu0 %v338
  %v412 = vpop.f32.mrf.mxu0
  %v413 = vadd.f32 %v329, %v412
  %v414 = vpop.f32.mrf.mxu0
  %415 = vmatprep.mubr.f32.mxu0 0.0
  %416 = vmatmul.mubr.f32.gmra.mxu0 %v341
  %v417 = vpop.f32.mrf.mxu0
  %v418 = vadd.f32 %v334, %v417
  %v419 = vpop.f32.mrf.mxu0
  %420 = vdwg.mxu0
  %vm421 = vcmask 654336
  %422 = vst.msk [vmem:[%s10] sm:$0xff] %vm421, %v413
  %vm423 = vcmask 650240
  %424 = vst.msk [vmem:[%s10 + $0x8] sm:$0xf] %vm423, %v418
  %v425 = vld [vmem:[%s8] sm:$0xff]
  %v426 = vld [vmem:[%s8 + $0x8] sm:$0xff]
  %v427 = vld [vmem:[%s8 + $0x10] sm:$0xff]
  %v428 = vld [vmem:[%s8 + $0x18] sm:$0xff]
  %v429 = vld [vmem:[%s8 + $0x20] sm:$0xff]
  %v430 = vld [vmem:[%s9] sm:$0xff]
  %v431 = vld [vmem:[%s9 + $0x8] sm:$0xff]
  %v432 = vld [vmem:[%s9 + $0x10] sm:$0xff]
  %v433 = vld [vmem:[%s9 + $0x18] sm:$0xff]
  %v434 = vld [vmem:[%s9 + $0x20] sm:$0xff]
  %v435 = vld [vmem:[%s7] sm:$0xff]
  %v436 = vld [vmem:[%s7 + $0x8] sm:$0xff]
  %vm437 = vcmask 326656
  %v439 = vsel %vm437, %v435, 0
  %v442 = vsel %vm437, %v436, 0
  %444 = vmatprep.subr.mxu0 0.0
  %445 = vmatpush1.msra.mxu0 0.0
  %446 = vmatprep.subr.mxu0 0.0
  %447 = vmatpush1.msra.mxu0 0.0
  %448 = vmatprep.subr.mxu0 0.0
  %449 = vmatpush1.msra.mxu0 0.0
  %450 = vmatprep.subr.mxu0 0.0
  %451 = vmatpush1.msra.mxu0 0.0
  %452 = vmatprep.subr.mxu0 0.0
  %453 = vmatpush1.msra.mxu0 0.0
  %454 = vmatprep.subr.mxu0 0.0
  %455 = vmatpush1.msra.mxu0 0.0
  %456 = vmatprep.subr.mxu0 0.0
  %457 = vmatpush1.msra.mxu0 0.0
  %458 = vmatprep.subr.mxu0 0.0
  %459 = vmatpush1.msra.mxu0 0.0
  %460 = vmatprep.subr.mxu0 0.0
  %461 = vmatpush1.msra.mxu0 0.0
  %462 = vmatprep.subr.mxu0 0.0
  %463 = vmatpush1.msra.mxu0 0.0
  %464 = vmatprep.subr.mxu0 0.0
  %465 = vmatpush1.msra.mxu0 0.0
  %466 = vmatprep.subr.mxu0 0.0
  %467 = vmatpush1.msra.mxu0 %v429
  %468 = vmatprep.subr.mxu0 0.0
  %469 = vmatpush1.msra.mxu0 %v428
  %470 = vmatprep.subr.mxu0 0.0
  %471 = vmatpush1.msra.mxu0 %v427
  %472 = vmatprep.subr.mxu0 0.0
  %473 = vmatpush1.msra.mxu0 %v426
  %474 = vmatprep.subr.mxu0 0.0
  %475 = vmatpush1.msra.mxu0 %v425
  %476 = vmatprep.subr.mxu0 0.0
  %477 = vmatpush2.msra.mxu0 0.0
  %478 = vmatprep.subr.mxu0 0.0
  %479 = vmatpush2.msra.mxu0 0.0
  %480 = vmatprep.subr.mxu0 0.0
  %481 = vmatpush2.msra.mxu0 0.0
  %482 = vmatprep.subr.mxu0 0.0
  %483 = vmatpush2.msra.mxu0 0.0
  %484 = vmatprep.subr.mxu0 0.0
  %485 = vmatpush2.msra.mxu0 0.0
  %486 = vmatprep.subr.mxu0 0.0
  %487 = vmatpush2.msra.mxu0 0.0
  %488 = vmatprep.subr.mxu0 0.0
  %489 = vmatpush2.msra.mxu0 0.0
  %490 = vmatprep.subr.mxu0 0.0
  %491 = vmatpush2.msra.mxu0 0.0
  %492 = vmatprep.subr.mxu0 0.0
  %493 = vmatpush2.msra.mxu0 0.0
  %494 = vmatprep.subr.mxu0 0.0
  %495 = vmatpush2.msra.mxu0 0.0
  %496 = vmatprep.subr.mxu0 0.0
  %497 = vmatpush2.msra.mxu0 0.0
  %498 = vmatprep.subr.mxu0 0.0
  %499 = vmatpush2.msra.mxu0 0.0
  %500 = vmatprep.subr.mxu0 0.0
  %501 = vmatpush2.msra.mxu0 0.0
  %502 = vmatprep.subr.mxu0 0.0
  %503 = vmatpush2.msra.mxu0 0.0
  %504 = vmatprep.subr.mxu0 0.0
  %505 = vmatpush2.msra.mxu0 0.0
  %506 = vmatprep.subr.mxu0 0.0
  %507 = vmatpush2.msra.mxu0 0.0
  %508 = vmatprep.mubr.f32.mxu0 0.0
  %509 = vmatmul.mubr.f32.gmra.mxu0 %v439
  %v510 = vpop.f32.mrf.mxu0
  %v511 = vadd.f32 0.0, %v510
  %v512 = vpop.f32.mrf.mxu0
  %513 = vmatprep.mubr.f32.mxu0 0.0
  %514 = vmatmul.mubr.f32.gmra.mxu0 %v442
  %v515 = vpop.f32.mrf.mxu0
  %v516 = vadd.f32 0.0, %v515
  %v517 = vpop.f32.mrf.mxu0
  %518 = vdwg.mxu0
  %v519 = vtanh.pop %v511
  %v520 = vtanh.pop %v516
  %v522 = vsel %vm437, %v519, 0
  %v525 = vsel %vm437, %v520, 0
  %527 = vmatprep.subr.mxu0 0.0
  %528 = vmatpush1.msra.mxu0 0.0
  %529 = vmatprep.subr.mxu0 0.0
  %530 = vmatpush1.msra.mxu0 0.0
  %531 = vmatprep.subr.mxu0 0.0
  %532 = vmatpush1.msra.mxu0 0.0
  %533 = vmatprep.subr.mxu0 0.0
  %534 = vmatpush1.msra.mxu0 0.0
  %535 = vmatprep.subr.mxu0 0.0
  %536 = vmatpush1.msra.mxu0 0.0
  %537 = vmatprep.subr.mxu0 0.0
  %538 = vmatpush1.msra.mxu0 0.0
  %539 = vmatprep.subr.mxu0 0.0
  %540 = vmatpush1.msra.mxu0 0.0
  %541 = vmatprep.subr.mxu0 0.0
  %542 = vmatpush1.msra.mxu0 0.0
  %543 = vmatprep.subr.mxu0 0.0
  %544 = vmatpush1.msra.mxu0 0.0
  %545 = vmatprep.subr.mxu0 0.0
  %546 = vmatpush1.msra.mxu0 0.0
  %547 = vmatprep.subr.mxu0 0.0
  %548 = vmatpush1.msra.mxu0 0.0
  %549 = vmatprep.subr.mxu0 0.0
  %550 = vmatpush1.msra.mxu0 %v434
  %551 = vmatprep.subr.mxu0 0.0
  %552 = vmatpush1.msra.mxu0 %v433
  %553 = vmatprep.subr.mxu0 0.0
  %554 = vmatpush1.msra.mxu0 %v432
  %555 = vmatprep.subr.mxu0 0.0
  %556 = vmatpush1.msra.mxu0 %v431
  %557 = vmatprep.subr.mxu0 0.0
  %558 = vmatpush1.msra.mxu0 %v430
  %559 = vmatprep.subr.mxu0 0.0
  %560 = vmatpush2.msra.mxu0 0.0
  %561 = vmatprep.subr.mxu0 0.0
  %562 = vmatpush2.msra.mxu0 0.0
  %563 = vmatprep.subr.mxu0 0.0
  %564 = vmatpush2.msra.mxu0 0.0
  %565 = vmatprep.subr.mxu0 0.0
  %566 = vmatpush2.msra.mxu0 0.0
  %567 = vmatprep.subr.mxu0 0.0
  %568 = vmatpush2.msra.mxu0 0.0
  %569 = vmatprep.subr.mxu0 0.0
  %570 = vmatpush2.msra.mxu0 0.0
  %571 = vmatprep.subr.mxu0 0.0
  %572 = vmatpush2.msra.mxu0 0.0
  %573 = vmatprep.subr.mxu0 0.0
  %574 = vmatpush2.msra.mxu0 0.0
  %575 = vmatprep.subr.mxu0 0.0
  %576 = vmatpush2.msra.mxu0 0.0
  %577 = vmatprep.subr.mxu0 0.0
  %578 = vmatpush2.msra.mxu0 0.0
  %579 = vmatprep.subr.mxu0 0.0
  %580 = vmatpush2.msra.mxu0 0.0
  %581 = vmatprep.subr.mxu0 0.0
  %582 = vmatpush2.msra.mxu0 0.0
  %583 = vmatprep.subr.mxu0 0.0
  %584 = vmatpush2.msra.mxu0 0.0
  %585 = vmatprep.subr.mxu0 0.0
  %586 = vmatpush2.msra.mxu0 0.0
  %587 = vmatprep.subr.mxu0 0.0
  %588 = vmatpush2.msra.mxu0 0.0
  %589 = vmatprep.subr.mxu0 0.0
  %590 = vmatpush2.msra.mxu0 0.0
  %591 = vmatprep.mubr.f32.mxu0 0.0
  %592 = vmatmul.mubr.f32.gmra.mxu0 %v522
  %v593 = vpop.f32.mrf.mxu0
  %v594 = vadd.f32 0.0, %v593
  %v595 = vpop.f32.mrf.mxu0
  %596 = vmatprep.mubr.f32.mxu0 0.0
  %597 = vmatmul.mubr.f32.gmra.mxu0 %v525
  %v598 = vpop.f32.mrf.mxu0
  %v599 = vadd.f32 0.0, %v598
  %v600 = vpop.f32.mrf.mxu0
  %601 = vdwg.mxu0
  %v602 = vsel %vm71, %v594, -inf
  %v603 = vsel %vm71, %v599, -inf
  %v604 = vmax.f32 %v602, %v603
  %v605 = vrot.slane %v604, 4
  %v606 = vmax.f32 %v604, %v605
  %v607 = vrot.slane %v606, 2
  %v608 = vmax.f32 %v606, %v607
  %v609 = vrot.slane %v608, 1
  %v610 = vmax.f32 %v608, %v609
  %v611 = vsub.f32 %v594, %v610
  %v612 = vsub.f32 %v599, %v610
  %v613 = vmul.f32 %v611, 1.442695
  %v614 = vpow.pop %v613
  %v615 = vmul.f32 %v612, 1.442695
  %v616 = vpow.pop %v615
  %v617 = vsel %vm71, %v614, 0.0
  %v618 = vsel %vm71, %v616, 0.0
  %v619 = vadd.f32 %v617, %v618
  %v620 = vrot.slane %v619, 4
  %v621 = vadd.f32 %v619, %v620
  %v622 = vrot.slane %v621, 2
  %v623 = vadd.f32 %v621, %v622
  %v624 = vrot.slane %v623, 1
  %v625 = vadd.f32 %v623, %v624
  %v626 = vrcp.pop %v625
  %v627 = vmul.f32 %v614, %v626
  %v628 = vmul.f32 %v616, %v626
  %630 = vset.pattern.permute.xlu0 0
  %631 = vperm.xlu0 %630, %v627
  %v632 = vpop.permute.xlu0 %631
  %635 = vset.pattern.permute.xlu0 0
  %636 = vperm.xlu0 %635, %v628
  %v637 = vpop.permute.xlu0 %636
  %v639 = vmul.f32 %v632, %v435
  %v640 = vmul.f32 %v637, %v436
  %v641 = vsel %vm437, %v639, 0.0
  %v642 = vsel %vm437, %v640, 0.0
  %v643 = vadd.f32 %v641, %v642
  %v644 = vrot.slane %v643, 4
  %v645 = vadd.f32 %v643, %v644
  %v646 = vrot.slane %v645, 2
  %v647 = vadd.f32 %v645, %v646
  %v648 = vrot.slane %v647, 1
  %v649 = vadd.f32 %v647, %v648
  %s650 = scalar_lea.vmem %s7, 16
  %v651 = vld [vmem:[%s650] sm:$0xff]
  %v652 = vld [vmem:[%s650 + $0x8] sm:$0xff]
  %v654 = vsel %vm437, %v651, 0
  %v657 = vsel %vm437, %v652, 0
  %659 = vmatprep.subr.mxu0 0.0
  %660 = vmatpush1.msra.mxu0 0.0
  %661 = vmatprep.subr.mxu0 0.0
  %662 = vmatpush1.msra.mxu0 0.0
  %663 = vmatprep.subr.mxu0 0.0
  %664 = vmatpush1.msra.mxu0 0.0
  %665 = vmatprep.subr.mxu0 0.0
  %666 = vmatpush1.msra.mxu0 0.0
  %667 = vmatprep.subr.mxu0 0.0
  %668 = vmatpush1.msra.mxu0 0.0
  %669 = vmatprep.subr.mxu0 0.0
  %670 = vmatpush1.msra.mxu0 0.0
  %671 = vmatprep.subr.mxu0 0.0
  %672 = vmatpush1.msra.mxu0 0.0
  %673 = vmatprep.subr.mxu0 0.0
  %674 = vmatpush1.msra.mxu0 0.0
  %675 = vmatprep.subr.mxu0 0.0
  %676 = vmatpush1.msra.mxu0 0.0
  %677 = vmatprep.subr.mxu0 0.0
  %678 = vmatpush1.msra.mxu0 0.0
  %679 = vmatprep.subr.mxu0 0.0
  %680 = vmatpush1.msra.mxu0 0.0
  %681 = vmatprep.subr.mxu0 0.0
  %682 = vmatpush1.msra.mxu0 %v429
  %683 = vmatprep.subr.mxu0 0.0
  %684 = vmatpush1.msra.mxu0 %v428
  %685 = vmatprep.subr.mxu0 0.0
  %686 = vmatpush1.msra.mxu0 %v427
  %687 = vmatprep.subr.mxu0 0.0
  %688 = vmatpush1.msra.mxu0 %v426
  %689 = vmatprep.subr.mxu0 0.0
  %690 = vmatpush1.msra.mxu0 %v425
  %691 = vmatprep.subr.mxu0 0.0
  %692 = vmatpush2.msra.mxu0 0.0
  %693 = vmatprep.subr.mxu0 0.0
  %694 = vmatpush2.msra.mxu0 0.0
  %695 = vmatprep.subr.mxu0 0.0
  %696 = vmatpush2.msra.mxu0 0.0
  %697 = vmatprep.subr.mxu0 0.0
  %698 = vmatpush2.msra.mxu0 0.0
  %699 = vmatprep.subr.mxu0 0.0
  %700 = vmatpush2.msra.mxu0 0.0
  %701 = vmatprep.subr.mxu0 0.0
  %702 = vmatpush2.msra.mxu0 0.0
  %703 = vmatprep.subr.mxu0 0.0
  %704 = vmatpush2.msra.mxu0 0.0
  %705 = vmatprep.subr.mxu0 0.0
  %706 = vmatpush2.msra.mxu0 0.0
  %707 = vmatprep.subr.mxu0 0.0
  %708 = vmatpush2.msra.mxu0 0.0
  %709 = vmatprep.subr.mxu0 0.0
  %710 = vmatpush2.msra.mxu0 0.0
  %711 = vmatprep.subr.mxu0 0.0
  %712 = vmatpush2.msra.mxu0 0.0
  %713 = vmatprep.subr.mxu0 0.0
  %714 = vmatpush2.msra.mxu0 0.0
  %715 = vmatprep.subr.mxu0 0.0
  %716 = vmatpush2.msra.mxu0 0.0
  %717 = vmatprep.subr.mxu0 0.0
  %718 = vmatpush2.msra.mxu0 0.0
  %719 = vmatprep.subr.mxu0 0.0
  %720 = vmatpush2.msra.mxu0 0.0
  %721 = vmatprep.subr.mxu0 0.0
  %722 = vmatpush2.msra.mxu0 0.0
  %723 = vmatprep.mubr.f32.mxu0 0.0
  %724 = vmatmul.mubr.f32.gmra.mxu0 %v654
  %v725 = vpop.f32.mrf.mxu0
  %v726 = vadd.f32 0.0, %v725
  %v727 = vpop.f32.mrf.mxu0
  %728 = vmatprep.mubr.f32.mxu0 0.0
  %729 = vmatmul.mubr.f32.gmra.mxu0 %v657
  %v730 = vpop.f32.mrf.mxu0
  %v731 = vadd.f32 0.0, %v730
  %v732 = vpop.f32.mrf.mxu0
  %733 = vdwg.mxu0
  %v734 = vtanh.pop %v726
  %v735 = vtanh.pop %v731
  %v737 = vsel %vm437, %v734, 0
  %v740 = vsel %vm437, %v735, 0
  %742 = vmatprep.subr.mxu0 0.0
  %743 = vmatpush1.msra.mxu0 0.0
  %744 = vmatprep.subr.mxu0 0.0
  %745 = vmatpush1.msra.mxu0 0.0
  %746 = vmatprep.subr.mxu0 0.0
  %747 = vmatpush1.msra.mxu0 0.0
  %748 = vmatprep.subr.mxu0 0.0
  %749 = vmatpush1.msra.mxu0 0.0
  %750 = vmatprep.subr.mxu0 0.0
  %751 = vmatpush1.msra.mxu0 0.0
  %752 = vmatprep.subr.mxu0 0.0
  %753 = vmatpush1.msra.mxu0 0.0
  %754 = vmatprep.subr.mxu0 0.0
  %755 = vmatpush1.msra.mxu0 0.0
  %756 = vmatprep.subr.mxu0 0.0
  %757 = vmatpush1.msra.mxu0 0.0
  %758 = vmatprep.subr.mxu0 0.0
  %759 = vmatpush1.msra.mxu0 0.0
  %760 = vmatprep.subr.mxu0 0.0
  %761 = vmatpush1.msra.mxu0 0.0
  %762 = vmatprep.subr.mxu0 0.0
  %763 = vmatpush1.msra.mxu0 0.0
  %764 = vmatprep.subr.mxu0 0.0
  %765 = vmatpush1.msra.mxu0 %v434
  %766 = vmatprep.subr.mxu0 0.0
  %767 = vmatpush1.msra.mxu0 %v433
  %768 = vmatprep.subr.mxu0 0.0
  %769 = vmatpush1.msra.mxu0 %v432
  %770 = vmatprep.subr.mxu0 0.0
  %771 = vmatpush1.msra.mxu0 %v431
  %772 = vmatprep.subr.mxu0 0.0
  %773 = vmatpush1.msra.mxu0 %v430
  %774 = vmatprep.subr.mxu0 0.0
  %775 = vmatpush2.msra.mxu0 0.0
  %776 = vmatprep.subr.mxu0 0.0
  %777 = vmatpush2.msra.mxu0 0.0
  %778 = vmatprep.subr.mxu0 0.0
  %779 = vmatpush2.msra.mxu0 0.0
  %780 = vmatprep.subr.mxu0 0.0
  %781 = vmatpush2.msra.mxu0 0.0
  %782 = vmatprep.subr.mxu0 0.0
  %783 = vmatpush2.msra.mxu0 0.0
  %784 = vmatprep.subr.mxu0 0.0
  %785 = vmatpush2.msra.mxu0 0.0
  %786 = vmatprep.subr.mxu0 0.0
  %787 = vmatpush2.msra.mxu0 0.0
  %788 = vmatprep.subr.mxu0 0.0
  %789 = vmatpush2.msra.mxu0 0.0
  %790 = vmatprep.subr.mxu0 0.0
  %791 = vmatpush2.msra.mxu0 0.0
  %792 = vmatprep.subr.mxu0 0.0
  %793 = vmatpush2.msra.mxu0 0.0
  %794 = vmatprep.subr.mxu0 0.0
  %795 = vmatpush2.msra.mxu0 0.0
  %796 = vmatprep.subr.mxu0 0.0
  %797 = vmatpush2.msra.mxu0 0.0
  %798 = vmatprep.subr.mxu0 0.0
  %799 = vmatpush2.msra.mxu0 0.0
  %800 = vmatprep.subr.mxu0 0.0
  %801 = vmatpush2.msra.mxu0 0.0
  %802 = vmatprep.subr.mxu0 0.0
  %803 = vmatpush2.msra.mxu0 0.0
  %804 = vmatprep.subr.mxu0 0.0
  %805 = vmatpush2.msra.mxu0 0.0
  %806 = vmatprep.mubr.f32.mxu0 0.0
  %807 = vmatmul.mubr.f32.gmra.mxu0 %v737
  %v808 = vpop.f32.mrf.mxu0
  %v809 = vadd.f32 0.0, %v808
  %v810 = vpop.f32.mrf.mxu0
  %811 = vmatprep.mubr.f32.mxu0 0.0
  %812 = vmatmul.mubr.f32.gmra.mxu0 %v740
  %v813 = vpop.f32.mrf.mxu0
  %v814 = vadd.f32 0.0, %v813
  %v815 = vpop.f32.mrf.mxu0
  %816 = vdwg.mxu0
  %v817 = vsel %vm71, %v809, -inf
  %v818 = vsel %vm71, %v814, -inf
  %v819 = vmax.f32 %v817, %v818
  %v820 = vrot.slane %v819, 4
  %v821 = vmax.f32 %v819, %v820
  %v822 = vrot.slane %v821, 2
  %v823 = vmax.f32 %v821, %v822
  %v824 = vrot.slane %v823, 1
  %v825 = vmax.f32 %v823, %v824
  %v826 = vsub.f32 %v809, %v825
  %v827 = vsub.f32 %v814, %v825
  %v828 = vmul.f32 %v826, 1.442695
  %v829 = vpow.pop %v828
  %v830 = vmul.f32 %v827, 1.442695
  %v831 = vpow.pop %v830
  %v832 = vsel %vm71, %v829, 0.0
  %v833 = vsel %vm71, %v831, 0.0
  %v834 = vadd.f32 %v832, %v833
  %v835 = vrot.slane %v834, 4
  %v836 = vadd.f32 %v834, %v835
  %v837 = vrot.slane %v836, 2
  %v838 = vadd.f32 %v836, %v837
  %v839 = vrot.slane %v838, 1
  %v840 = vadd.f32 %v838, %v839
  %v841 = vrcp.pop %v840
  %v842 = vmul.f32 %v829, %v841
  %v843 = vmul.f32 %v831, %v841
  %845 = vset.pattern.permute.xlu0 0
  %846 = vperm.xlu0 %845, %v842
  %v847 = vpop.permute.xlu0 %846
  %850 = vset.pattern.permute.xlu0 0
  %851 = vperm.xlu0 %850, %v843
  %v852 = vpop.permute.xlu0 %851
  %v854 = vmul.f32 %v847, %v651
  %v855 = vmul.f32 %v852, %v652
  %v856 = vsel %vm437, %v854, 0.0
  %v857 = vsel %vm437, %v855, 0.0
  %v858 = vadd.f32 %v856, %v857
  %v859 = vrot.slane %v858, 4
  %v860 = vadd.f32 %v858, %v859
  %v861 = vrot.slane %v860, 2
  %v862 = vadd.f32 %v860, %v861
  %v863 = vrot.slane %v862, 1
  %v864 = vadd.f32 %v862, %v863
  %vm865 = vcmask 1040384
  %v866 = vsel %vm865, %v649, %v864
  %vm867 = vcmask 320512
  %868 = vst.msk [vmem:[%s11] sm:$0x3] %vm867, %v866
  // Predicated region
  $region42: #{social_stgcnn_adaptive_forward.3} parent=0 // pred_check
    _
  $region43: #{social_stgcnn_adaptive_forward.3} parent=0 // pred_check_branch
    %870 = sbr.rel (0) target = $region45
  $region44: #{social_stgcnn_adaptive_forward.3} parent=0 // pred_region
    _
  $region45: #{social_stgcnn_adaptive_forward.3} parent=0 // pred_fallthru
    _
  // Predicated region
  $region46: #{social_stgcnn_adaptive_forward.3} parent=0 // pred_check
    _
  $region47: #{social_stgcnn_adaptive_forward.3} parent=0 // pred_check_branch
    %872 = sbr.rel (0) target = $region49
  $region48: #{social_stgcnn_adaptive_forward.3} parent=0 // pred_region
    _
  $region49: #{social_stgcnn_adaptive_forward.3} parent=0 // pred_fallthru
    _
  // Predicated region
  $region50: #{social_stgcnn_adaptive_forward.3} parent=0 // pred_check
    _
  $region51: #{social_stgcnn_adaptive_forward.3} parent=0 // pred_check_branch
    %874 = sbr.rel (0) target = $region53
  $region52: #{social_stgcnn_adaptive_forward.3} parent=0 // pred_region
    _
  $region53: #{social_stgcnn_adaptive_forward.3} parent=0 // pred_fallthru
    _
  // Predicated region
  $region54: #{social_stgcnn_adaptive_forward.3} parent=0 // pred_check
    _
  $region55: #{social_stgcnn_adaptive_forward.3} parent=0 // pred_check_branch
    %876 = sbr.rel (0) target = $region57
  $region56: #{social_stgcnn_adaptive_forward.3} parent=0 // pred_region
    _
  $region57: #{social_stgcnn_adaptive_forward.3} parent=0 // pred_fallthru
    _

// kernel: social_stgcnn_adaptive_forward.2
$region0: #{social_stgcnn_adaptive_forward.2}
  #allocation0 [shape = 'u32[]', space=smem, size = 0x4, offset = 0x4, fixed_abs, tag = 'smem constant byte address 0x4 - core index']
  #allocation1 [shape = 'u32[144,128]{1,0:T(1,128)}', space=vmem, size = 0x12000, scoped, tag = 'internal scratch']
  %s0 = inlined_call_operand.vmem [shape: f32[2,2,128], index: 0, kind: input, shape index: {}]
  %s1 = inlined_call_operand.vmem [shape: f32[2,128,128], index: 1, kind: input, shape index: {}]
  %s2 = inlined_call_operand.vmem [shape: f32[5,2], index: 2, kind: input, shape index: {}]
  %s3 = inlined_call_operand.vmem [shape: f32[5,1], index: 3, kind: input, shape index: {}]
  %s4 = inlined_call_operand.vmem [shape: f32[5,1], index: 4, kind: input, shape index: {}]
  %s5 = inlined_call_operand.vmem [shape: f32[5,1], index: 5, kind: input, shape index: {}]
  %s6 = inlined_call_operand.vmem [shape: f32[3,5,5], index: 6, kind: input, shape index: {}]
  %s7 = inlined_call_operand.vmem [shape: f32[5,1], index: 7, kind: input, shape index: {}]
  %s8 = inlined_call_operand.vmem [shape: f32[5,2], index: 8, kind: input, shape index: {}]
  %s9 = inlined_call_operand.vmem [shape: f32[5,1], index: 9, kind: input, shape index: {}]
  %s10 = inlined_call_operand.vmem [shape: f32[5,1], index: 10, kind: input, shape index: {}]
  %s11 = inlined_call_operand.vmem [shape: f32[2,5,128], index: 11, kind: output, shape index: {}]
  %s12 = sld [smem:[#allocation0]]
  $region77: #{social_stgcnn_adaptive_forward.2} parent=0
    _
  %s14 = ssub.s32 1, %s12
  %s15 = scalar_select 0, %s14, %s12
  loop: start=0, step=1, limit=4
  $region2: #{social_stgcnn_adaptive_forward.2} parent=0 // loop_pre_header
    _
  $region3: #{social_stgcnn_adaptive_forward.2} parent=0 // loop_header
    %s17 = sphi 0, %s21
    %p18 = scmp.ge.s32.totalorder %s17, 4
    %s27 = sphi 0, %s29
    %s30 = sphi 0, %s27
    %s31 = sphi 0, %s30
    %s47 = sphi 0, %s31
    %s53 = sphi 0, %s55
    %s56 = sphi 0, %s53
    %s57 = sphi 0, %s56
    %s73 = sphi 0, %s57
    %s77 = sphi 0, %s77
    %s79 = sphi 0, %s77
    %s80 = sphi 0, %s79
    %s94 = sphi 0, %s80
    %s98 = sphi 0, %s98
    %s100 = sphi 0, %s98
    %s101 = sphi 0, %s100
    %s115 = sphi 0, %s101
    %s119 = sphi 0, %s119
    %s121 = sphi 0, %s119
    %s122 = sphi 0, %s121
    %s136 = sphi 0, %s122
    %s140 = sphi 0, %s140
    %s142 = sphi 0, %s140
    %s143 = sphi 0, %s142
    %s157 = sphi 0, %s143
    %s161 = sphi 0, %s161
    %s163 = sphi 0, %s161
    %s164 = sphi 0, %s163
    %s178 = sphi 0, %s164
    %s182 = sphi 0, %s182
    %s184 = sphi 0, %s182
    %s185 = sphi 0, %s184
    %s199 = sphi 0, %s185
    %s203 = sphi 0, %s203
    %s205 = sphi 0, %s203
    %s206 = sphi 0, %s205
    %s220 = sphi 0, %s206
    %s224 = sphi 0, %s224
    %s226 = sphi 0, %s224
    %s227 = sphi 0, %s226
    %s241 = sphi 0, %s227
    %s245 = sphi 0, %s245
    %s247 = sphi 0, %s245
    %s248 = sphi 0, %s247
    %s262 = sphi 0, %s248
    %s268 = sphi 0, %s270
    %s271 = sphi 0, %s268
    %s272 = sphi 0, %s271
    %s288 = sphi 0, %s272
  $region4: #{social_stgcnn_adaptive_forward.2} parent=0 // loop_header_branch
    %20 = sbr.rel (%p18) target = $region8
  $region5: #{social_stgcnn_adaptive_forward.2} parent=0 // loop_body
    %s22 = ssub.s32 %s17, 1
    %s23 = ssub.s32 %s17, 2
    %s24 = sadd.s32 %s17, 1
    %s25 = ssub.s32 %s17, %s24
    %p26 = scmp.eq.s32.totalorder %s25, 0
    %s28 = sadd.s32 %s27, 1
    %s29 = scalar_select %p26, %s27, %s28
    %p32 = pneg %p26
    %p33 = scmp.eq.s32.totalorder %s17, 1
    %p34 = por %p32, %p33
    %p35 = scmp.ne.s32.totalorder %s27, %s30
    %p36 = scmp.eq.s32.totalorder %s17, 0
    %p37 = por %p35, %p36
    %p38 = scmp.ne.s32.totalorder %s27, %s30
    %p39 = scmp.eq.s32.totalorder %s22, 1
    %p40 = por %p38, %p39
    %p41 = scmp.ne.s32.totalorder %s30, %s31
    %p42 = scmp.eq.s32.totalorder %s22, 0
    %p43 = por %p41, %p42
    %p44 = scmp.ne.s32.totalorder %s30, %s31
    %p45 = scmp.eq.s32.totalorder %s23, 1
    %p46 = por %p44, %p45
    %p48 = scmp.ne.s32.totalorder %s31, %s47
    %p49 = scmp.eq.s32.totalorder %s23, 0
    %p50 = por %p48, %p49
    %s51 = ssub.s32 %s17, %s24
    %p52 = scmp.eq.s32.totalorder %s51, 0
    %s54 = sadd.s32 %s53, 1
    %s55 = scalar_select %p52, %s53, %s54
    %p58 = pneg %p52
    %p59 = scmp.eq.s32.totalorder %s17, 1
    %p60 = por %p58, %p59
    %p61 = scmp.ne.s32.totalorder %s53, %s56
    %p62 = scmp.eq.s32.totalorder %s17, 0
    %p63 = por %p61, %p62
    %p64 = scmp.ne.s32.totalorder %s53, %s56
    %p65 = scmp.eq.s32.totalorder %s22, 1
    %p66 = por %p64, %p65
    %p67 = scmp.ne.s32.totalorder %s56, %s57
    %p68 = scmp.eq.s32.totalorder %s22, 0
    %p69 = por %p67, %p68
    %p70 = scmp.ne.s32.totalorder %s56, %s57
    %p71 = scmp.eq.s32.totalorder %s23, 1
    %p72 = por %p70, %p71
    %p74 = scmp.ne.s32.totalorder %s57, %s73
    %p75 = scmp.eq.s32.totalorder %s23, 0
    %p76 = por %p74, %p75
    %s78 = sadd.s32 %s77, 1
    %p81 = scmp.eq.s32.totalorder %s17, 1
    %p82 = scmp.ne.s32.totalorder %s77, %s79
    %p83 = scmp.eq.s32.totalorder %s17, 0
    %p84 = por %p82, %p83
    %p85 = scmp.ne.s32.totalorder %s77, %s79
    %p86 = scmp.eq.s32.totalorder %s22, 1
    %p87 = por %p85, %p86
    %p88 = scmp.ne.s32.totalorder %s79, %s80
    %p89 = scmp.eq.s32.totalorder %s22, 0
    %p90 = por %p88, %p89
    %p91 = scmp.ne.s32.totalorder %s79, %s80
    %p92 = scmp.eq.s32.totalorder %s23, 1
    %p93 = por %p91, %p92
    %p95 = scmp.ne.s32.totalorder %s80, %s94
    %p96 = scmp.eq.s32.totalorder %s23, 0
    %p97 = por %p95, %p96
    %s99 = sadd.s32 %s98, 1
    %p102 = scmp.eq.s32.totalorder %s17, 1
    %p103 = scmp.ne.s32.totalorder %s98, %s100
    %p104 = scmp.eq.s32.totalorder %s17, 0
    %p105 = por %p103, %p104
    %p106 = scmp.ne.s32.totalorder %s98, %s100
    %p107 = scmp.eq.s32.totalorder %s22, 1
    %p108 = por %p106, %p107
    %p109 = scmp.ne.s32.totalorder %s100, %s101
    %p110 = scmp.eq.s32.totalorder %s22, 0
    %p111 = por %p109, %p110
    %p112 = scmp.ne.s32.totalorder %s100, %s101
    %p113 = scmp.eq.s32.totalorder %s23, 1
    %p114 = por %p112, %p113
    %p116 = scmp.ne.s32.totalorder %s101, %s115
    %p117 = scmp.eq.s32.totalorder %s23, 0
    %p118 = por %p116, %p117
    %s120 = sadd.s32 %s119, 1
    %p123 = scmp.eq.s32.totalorder %s17, 1
    %p124 = scmp.ne.s32.totalorder %s119, %s121
    %p125 = scmp.eq.s32.totalorder %s17, 0
    %p126 = por %p124, %p125
    %p127 = scmp.ne.s32.totalorder %s119, %s121
    %p128 = scmp.eq.s32.totalorder %s22, 1
    %p129 = por %p127, %p128
    %p130 = scmp.ne.s32.totalorder %s121, %s122
    %p131 = scmp.eq.s32.totalorder %s22, 0
    %p132 = por %p130, %p131
    %p133 = scmp.ne.s32.totalorder %s121, %s122
    %p134 = scmp.eq.s32.totalorder %s23, 1
    %p135 = por %p133, %p134
    %p137 = scmp.ne.s32.totalorder %s122, %s136
    %p138 = scmp.eq.s32.totalorder %s23, 0
    %p139 = por %p137, %p138
    %s141 = sadd.s32 %s140, 1
    %p144 = scmp.eq.s32.totalorder %s17, 1
    %p145 = scmp.ne.s32.totalorder %s140, %s142
    %p146 = scmp.eq.s32.totalorder %s17, 0
    %p147 = por %p145, %p146
    %p148 = scmp.ne.s32.totalorder %s140, %s142
    %p149 = scmp.eq.s32.totalorder %s22, 1
    %p150 = por %p148, %p149
    %p151 = scmp.ne.s32.totalorder %s142, %s143
    %p152 = scmp.eq.s32.totalorder %s22, 0
    %p153 = por %p151, %p152
    %p154 = scmp.ne.s32.totalorder %s142, %s143
    %p155 = scmp.eq.s32.totalorder %s23, 1
    %p156 = por %p154, %p155
    %p158 = scmp.ne.s32.totalorder %s143, %s157
    %p159 = scmp.eq.s32.totalorder %s23, 0
    %p160 = por %p158, %p159
    %s162 = sadd.s32 %s161, 1
    %p165 = scmp.eq.s32.totalorder %s17, 1
    %p166 = scmp.ne.s32.totalorder %s161, %s163
    %p167 = scmp.eq.s32.totalorder %s17, 0
    %p168 = por %p166, %p167
    %p169 = scmp.ne.s32.totalorder %s161, %s163
    %p170 = scmp.eq.s32.totalorder %s22, 1
    %p171 = por %p169, %p170
    %p172 = scmp.ne.s32.totalorder %s163, %s164
    %p173 = scmp.eq.s32.totalorder %s22, 0
    %p174 = por %p172, %p173
    %p175 = scmp.ne.s32.totalorder %s163, %s164
    %p176 = scmp.eq.s32.totalorder %s23, 1
    %p177 = por %p175, %p176
    %p179 = scmp.ne.s32.totalorder %s164, %s178
    %p180 = scmp.eq.s32.totalorder %s23, 0
    %p181 = por %p179, %p180
    %s183 = sadd.s32 %s182, 1
    %p186 = scmp.eq.s32.totalorder %s17, 1
    %p187 = scmp.ne.s32.totalorder %s182, %s184
    %p188 = scmp.eq.s32.totalorder %s17, 0
    %p189 = por %p187, %p188
    %p190 = scmp.ne.s32.totalorder %s182, %s184
    %p191 = scmp.eq.s32.totalorder %s22, 1
    %p192 = por %p190, %p191
    %p193 = scmp.ne.s32.totalorder %s184, %s185
    %p194 = scmp.eq.s32.totalorder %s22, 0
    %p195 = por %p193, %p194
    %p196 = scmp.ne.s32.totalorder %s184, %s185
    %p197 = scmp.eq.s32.totalorder %s23, 1
    %p198 = por %p196, %p197
    %p200 = scmp.ne.s32.totalorder %s185, %s199
    %p201 = scmp.eq.s32.totalorder %s23, 0
    %p202 = por %p200, %p201
    %s204 = sadd.s32 %s203, 1
    %p207 = scmp.eq.s32.totalorder %s17, 1
    %p208 = scmp.ne.s32.totalorder %s203, %s205
    %p209 = scmp.eq.s32.totalorder %s17, 0
    %p210 = por %p208, %p209
    %p211 = scmp.ne.s32.totalorder %s203, %s205
    %p212 = scmp.eq.s32.totalorder %s22, 1
    %p213 = por %p211, %p212
    %p214 = scmp.ne.s32.totalorder %s205, %s206
    %p215 = scmp.eq.s32.totalorder %s22, 0
    %p216 = por %p214, %p215
    %p217 = scmp.ne.s32.totalorder %s205, %s206
    %p218 = scmp.eq.s32.totalorder %s23, 1
    %p219 = por %p217, %p218
    %p221 = scmp.ne.s32.totalorder %s206, %s220
    %p222 = scmp.eq.s32.totalorder %s23, 0
    %p223 = por %p221, %p222
    %s225 = sadd.s32 %s224, 1
    %p228 = scmp.eq.s32.totalorder %s17, 1
    %p229 = scmp.ne.s32.totalorder %s224, %s226
    %p230 = scmp.eq.s32.totalorder %s17, 0
    %p231 = por %p229, %p230
    %p232 = scmp.ne.s32.totalorder %s224, %s226
    %p233 = scmp.eq.s32.totalorder %s22, 1
    %p234 = por %p232, %p233
    %p235 = scmp.ne.s32.totalorder %s226, %s227
    %p236 = scmp.eq.s32.totalorder %s22, 0
    %p237 = por %p235, %p236
    %p238 = scmp.ne.s32.totalorder %s226, %s227
    %p239 = scmp.eq.s32.totalorder %s23, 1
    %p240 = por %p238, %p239
    %p242 = scmp.ne.s32.totalorder %s227, %s241
    %p243 = scmp.eq.s32.totalorder %s23, 0
    %p244 = por %p242, %p243
    %s246 = sadd.s32 %s245, 1
    %p249 = scmp.eq.s32.totalorder %s17, 1
    %p250 = scmp.ne.s32.totalorder %s245, %s247
    %p251 = scmp.eq.s32.totalorder %s17, 0
    %p252 = por %p250, %p251
    %p253 = scmp.ne.s32.totalorder %s245, %s247
    %p254 = scmp.eq.s32.totalorder %s22, 1
    %p255 = por %p253, %p254
    %p256 = scmp.ne.s32.totalorder %s247, %s248
    %p257 = scmp.eq.s32.totalorder %s22, 0
    %p258 = por %p256, %p257
    %p259 = scmp.ne.s32.totalorder %s247, %s248
    %p260 = scmp.eq.s32.totalorder %s23, 1
    %p261 = por %p259, %p260
    %p263 = scmp.ne.s32.totalorder %s248, %s262
    %p264 = scmp.eq.s32.totalorder %s23, 0
    %p265 = por %p263, %p264
    %s266 = ssub.s32 %s17, %s24
    %p267 = scmp.eq.s32.totalorder %s266, 0
    %s269 = sadd.s32 %s268, 1
    %s270 = scalar_select %p267, %s268, %s269
    %p273 = pneg %p267
    %p274 = scmp.eq.s32.totalorder %s17, 1
    %p275 = por %p273, %p274
    %p276 = scmp.ne.s32.totalorder %s268, %s271
    %p277 = scmp.eq.s32.totalorder %s17, 0
    %p278 = por %p276, %p277
    %p279 = scmp.ne.s32.totalorder %s268, %s271
    %p280 = scmp.eq.s32.totalorder %s22, 1
    %p281 = por %p279, %p280
    %p282 = scmp.ne.s32.totalorder %s271, %s272
    %p283 = scmp.eq.s32.totalorder %s22, 0
    %p284 = por %p282, %p283
    %p285 = scmp.ne.s32.totalorder %s271, %s272
    %p286 = scmp.eq.s32.totalorder %s23, 1
    %p287 = por %p285, %p286
    %p289 = scmp.ne.s32.totalorder %s272, %s288
    %p290 = scmp.eq.s32.totalorder %s23, 0
    %p291 = por %p289, %p290
    %p292 = scmp.le.s32.totalorder 1, %s17
    %p293 = scmp.lt.s32.totalorder %s17, 3
    %p294 = pnand %p292, %p293
    %p295 = pneg %p294
    // Predicated region
    $region9: #{social_stgcnn_adaptive_forward.2} parent=5 // pred_check
      _
    $region10: #{social_stgcnn_adaptive_forward.2} parent=5 // pred_check_branch
      %297 = sbr.rel (%p294) target = $region12
    $region11: #{social_stgcnn_adaptive_forward.2} parent=5 // pred_region
      %s298 = ssub.s32 %s17, 1
      // Predicated region
      $region13: #{social_stgcnn_adaptive_forward.2} parent=11 // pred_check
        %p299 = pneg %p90
      $region14: #{social_stgcnn_adaptive_forward.2} parent=11 // pred_check_branch
        %301 = sbr.rel (%p299) target = $region16
      $region15: #{social_stgcnn_adaptive_forward.2} parent=11 // pred_region
        _
      $region16: #{social_stgcnn_adaptive_forward.2} parent=11 // pred_fallthru
        _
      // Predicated region
      $region17: #{social_stgcnn_adaptive_forward.2} parent=11 // pred_check
        %p302 = pneg %p111
      $region18: #{social_stgcnn_adaptive_forward.2} parent=11 // pred_check_branch
        %304 = sbr.rel (%p302) target = $region20
      $region19: #{social_stgcnn_adaptive_forward.2} parent=11 // pred_region
        _
      $region20: #{social_stgcnn_adaptive_forward.2} parent=11 // pred_fallthru
        _
      // Predicated region
      $region21: #{social_stgcnn_adaptive_forward.2} parent=11 // pred_check
        %p305 = pneg %p132
      $region22: #{social_stgcnn_adaptive_forward.2} parent=11 // pred_check_branch
        %307 = sbr.rel (%p305) target = $region24
      $region23: #{social_stgcnn_adaptive_forward.2} parent=11 // pred_region
        _
      $region24: #{social_stgcnn_adaptive_forward.2} parent=11 // pred_fallthru
        _
      // Predicated region
      $region25: #{social_stgcnn_adaptive_forward.2} parent=11 // pred_check
        %p308 = pneg %p153
      $region26: #{social_stgcnn_adaptive_forward.2} parent=11 // pred_check_branch
        %310 = sbr.rel (%p308) target = $region28
      $region27: #{social_stgcnn_adaptive_forward.2} parent=11 // pred_region
        _
      $region28: #{social_stgcnn_adaptive_forward.2} parent=11 // pred_fallthru
        _
      // Predicated region
      $region29: #{social_stgcnn_adaptive_forward.2} parent=11 // pred_check
        %p311 = pneg %p174
      $region30: #{social_stgcnn_adaptive_forward.2} parent=11 // pred_check_branch
        %313 = sbr.rel (%p311) target = $region32
      $region31: #{social_stgcnn_adaptive_forward.2} parent=11 // pred_region
        _
      $region32: #{social_stgcnn_adaptive_forward.2} parent=11 // pred_fallthru
        _
      // Predicated region
      $region33: #{social_stgcnn_adaptive_forward.2} parent=11 // pred_check
        %p314 = pneg %p195
      $region34: #{social_stgcnn_adaptive_forward.2} parent=11 // pred_check_branch
        %316 = sbr.rel (%p314) target = $region36
      $region35: #{social_stgcnn_adaptive_forward.2} parent=11 // pred_region
        _
      $region36: #{social_stgcnn_adaptive_forward.2} parent=11 // pred_fallthru
        _
      // Predicated region
      $region37: #{social_stgcnn_adaptive_forward.2} parent=11 // pred_check
        %p317 = pneg %p216
      $region38: #{social_stgcnn_adaptive_forward.2} parent=11 // pred_check_branch
        %319 = sbr.rel (%p317) target = $region40
      $region39: #{social_stgcnn_adaptive_forward.2} parent=11 // pred_region
        _
      $region40: #{social_stgcnn_adaptive_forward.2} parent=11 // pred_fallthru
        _
      // Predicated region
      $region41: #{social_stgcnn_adaptive_forward.2} parent=11 // pred_check
        %p320 = pneg %p237
      $region42: #{social_stgcnn_adaptive_forward.2} parent=11 // pred_check_branch
        %322 = sbr.rel (%p320) target = $region44
      $region43: #{social_stgcnn_adaptive_forward.2} parent=11 // pred_region
        _
      $region44: #{social_stgcnn_adaptive_forward.2} parent=11 // pred_fallthru
        _
      // Predicated region
      $region45: #{social_stgcnn_adaptive_forward.2} parent=11 // pred_check
        %p323 = pneg %p258
      $region46: #{social_stgcnn_adaptive_forward.2} parent=11 // pred_check_branch
        %325 = sbr.rel (%p323) target = $region48
      $region47: #{social_stgcnn_adaptive_forward.2} parent=11 // pred_region
        _
      $region48: #{social_stgcnn_adaptive_forward.2} parent=11 // pred_fallthru
        _
    $region12: #{social_stgcnn_adaptive_forward.2} parent=5 // pred_fallthru
      _
    %p326 = scmp.lt.s32.totalorder %s17, 2
    // Predicated region
    $region49: #{social_stgcnn_adaptive_forward.2} parent=5 // pred_check
      %p327 = pneg %p326
    $region50: #{social_stgcnn_adaptive_forward.2} parent=5 // pred_check_branch
      %329 = sbr.rel (%p327) target = $region52
    $region51: #{social_stgcnn_adaptive_forward.2} parent=5 // pred_region
      // Predicated region
      $region53: #{social_stgcnn_adaptive_forward.2} parent=51 // pred_check
        %p330 = pneg %p37
      $region54: #{social_stgcnn_adaptive_forward.2} parent=51 // pred_check_branch
        %332 = sbr.rel (%p330) target = $region56
      $region55: #{social_stgcnn_adaptive_forward.2} parent=51 // pred_region
        %p333 = scmp.lt.s32.totalorder %s17, 1
        %s334 = scalar_select %p333, %s17, 1
        %s335 = smul.addr %s334, 2
        %s336 = scalar_lea.vmem %s0, %s335
      $region56: #{social_stgcnn_adaptive_forward.2} parent=51 // pred_fallthru
        _
      // Predicated region
      $region57: #{social_stgcnn_adaptive_forward.2} parent=51 // pred_check
        %p337 = pneg %p63
      $region58: #{social_stgcnn_adaptive_forward.2} parent=51 // pred_check_branch
        %339 = sbr.rel (%p337) target = $region60
      $region59: #{social_stgcnn_adaptive_forward.2} parent=51 // pred_region
        %p340 = scmp.lt.s32.totalorder %s17, 1
        %s341 = scalar_select %p340, %s17, 1
        %s342 = smul.addr %s341, 16
        %s343 = smul.addr %s342, 8
        %s344 = scalar_lea.vmem %s1, %s343
      $region60: #{social_stgcnn_adaptive_forward.2} parent=51 // pred_fallthru
        _
    $region52: #{social_stgcnn_adaptive_forward.2} parent=5 // pred_fallthru
      _
    %p345 = scmp.le.s32.totalorder 1, %s17
    %p346 = scmp.lt.s32.totalorder %s17, 3
    %p347 = pnand %p345, %p346
    %p348 = pneg %p347
    // Predicated region
    $region61: #{social_stgcnn_adaptive_forward.2} parent=5 // pred_check
      _
    $region62: #{social_stgcnn_adaptive_forward.2} parent=5 // pred_check_branch
      %350 = sbr.rel (%p347) target = $region64
    $region63: #{social_stgcnn_adaptive_forward.2} parent=5 // pred_region
      %s351 = ssub.s32 %s17, 1
      %p352 = scmp.lt.s32.totalorder %s22, 1
      %s353 = scalar_select %p352, %s22, 1
      %s354 = smul.addr %s353, 2
      %s355 = scalar_lea.vmem %s0, %s354
      %p356 = pneg %p43
      %p357 = pneg %p40
      %p358 = scmp.lt.s32.totalorder %s22, 1
      %s359 = scalar_select %p358, %s22, 1
      %s360 = smul.addr %s359, 16
      %s361 = smul.addr %s360, 8
      %s362 = scalar_lea.vmem %s1, %s361
      %p363 = pneg %p69
      %p364 = pneg %p66
      %p365 = pneg %p90
      %p366 = pneg %p87
      %p367 = pneg %p111
      %p368 = pneg %p108
      %p369 = pneg %p132
      %p370 = pneg %p129
      %p371 = pneg %p153
      %p372 = pneg %p150
      %p373 = pneg %p174
      %p374 = pneg %p171
      %p375 = pneg %p195
      %p376 = pneg %p192
      %p377 = pneg %p216
      %p378 = pneg %p213
      %p379 = pneg %p237
      %p380 = pneg %p234
      %p381 = pneg %p258
      %p382 = pneg %p255
      %p383 = pneg %p284
      %p384 = pneg %p281
      %p385 = scmp.lt.s32.totalorder %s22, 1
      %s386 = scalar_select %p385, %s22, 1
      %s387 = smul.addr %s386, 8
      %s388 = scalar_lea.vmem %s11, %s387
      %p389 = scmp.lt.s32.totalorder %s22, 1
      %s390 = scalar_select %p389, %s22, 1
      %s391 = smul.addr %s390, 2
      %s392 = scalar_lea.vmem %s0, %s391
      %p393 = scmp.lt.s32.totalorder %s22, 1
      %s394 = scalar_select %p393, %s22, 1
      %s395 = smul.addr %s394, 16
      %s396 = smul.addr %s395, 8
      %s397 = scalar_lea.vmem %s1, %s396
      %p398 = scmp.lt.s32.totalorder %s22, 1
      %s399 = scalar_select %p398, %s22, 1
      %s400 = smul.addr %s399, 8
      %s401 = scalar_lea.vmem %s11, %s400
      %v402 = vld [vmem:[%s392] sm:$0x3]
      %v403 = vld [vmem:[%s2] sm:$0x1f]
      %v404 = vld [vmem:[%s3] sm:$0x1f]
      %406 = vset.pattern.permute.xlu0 0
      %407 = vperm.xlu0 %406, %v404
      %v408 = vpop.permute.xlu0 %407
      %vm410 = vcmask 15360
      %v412 = vsel %vm410, %v403, 0
      %vm414 = vcmask 1041408
      %v416 = vsel %vm414, %v402, 0
      %418 = vmatprep.subr.mxu0 0.0
      %419 = vmatpush1.msra.mxu0 0.0
      %420 = vmatprep.subr.mxu0 0.0
      %421 = vmatpush1.msra.mxu0 0.0
      %422 = vmatprep.subr.mxu0 0.0
      %423 = vmatpush1.msra.mxu0 0.0
      %424 = vmatprep.subr.mxu0 0.0
      %425 = vmatpush1.msra.mxu0 0.0
      %426 = vmatprep.subr.mxu0 0.0
      %427 = vmatpush1.msra.mxu0 0.0
      %428 = vmatprep.subr.mxu0 0.0
      %429 = vmatpush1.msra.mxu0 0.0
      %430 = vmatprep.subr.mxu0 0.0
      %431 = vmatpush1.msra.mxu0 0.0
      %432 = vmatprep.subr.mxu0 0.0
      %433 = vmatpush1.msra.mxu0 0.0
      %434 = vmatprep.subr.mxu0 0.0
      %435 = vmatpush1.msra.mxu0 0.0
      %436 = vmatprep.subr.mxu0 0.0
      %437 = vmatpush1.msra.mxu0 0.0
      %438 = vmatprep.subr.mxu0 0.0
      %439 = vmatpush1.msra.mxu0 0.0
      %440 = vmatprep.subr.mxu0 0.0
      %441 = vmatpush1.msra.mxu0 0.0
      %442 = vmatprep.subr.mxu0 0.0
      %443 = vmatpush1.msra.mxu0 0.0
      %444 = vmatprep.subr.mxu0 0.0
      %445 = vmatpush1.msra.mxu0 0.0
      %446 = vmatprep.subr.mxu0 0.0
      %447 = vmatpush1.msra.mxu0 0.0
      %448 = vmatprep.subr.mxu0 0.0
      %449 = vmatpush1.msra.mxu0 %v416
      %450 = vmatprep.subr.mxu0 0.0
      %451 = vmatpush2.msra.mxu0 0.0
      %452 = vmatprep.subr.mxu0 0.0
      %453 = vmatpush2.msra.mxu0 0.0
      %454 = vmatprep.subr.mxu0 0.0
      %455 = vmatpush2.msra.mxu0 0.0
      %456 = vmatprep.subr.mxu0 0.0
      %457 = vmatpush2.msra.mxu0 0.0
      %458 = vmatprep.subr.mxu0 0.0
      %459 = vmatpush2.msra.mxu0 0.0
      %460 = vmatprep.subr.mxu0 0.0
      %461 = vmatpush2.msra.mxu0 0.0
      %462 = vmatprep.subr.mxu0 0.0
      %463 = vmatpush2.msra.mxu0 0.0
      %464 = vmatprep.subr.mxu0 0.0
      %465 = vmatpush2.msra.mxu0 0.0
      %466 = vmatprep.subr.mxu0 0.0
      %467 = vmatpush2.msra.mxu0 0.0
      %468 = vmatprep.subr.mxu0 0.0
      %469 = vmatpush2.msra.mxu0 0.0
      %470 = vmatprep.subr.mxu0 0.0
      %471 = vmatpush2.msra.mxu0 0.0
      %472 = vmatprep.subr.mxu0 0.0
      %473 = vmatpush2.msra.mxu0 0.0
      %474 = vmatprep.subr.mxu0 0.0
      %475 = vmatpush2.msra.mxu0 0.0
      %476 = vmatprep.subr.mxu0 0.0
      %477 = vmatpush2.msra.mxu0 0.0
      %478 = vmatprep.subr.mxu0 0.0
      %479 = vmatpush2.msra.mxu0 0.0
      %480 = vmatprep.subr.mxu0 0.0
      %481 = vmatpush2.msra.mxu0 0.0
      %482 = vmatprep.mubr.f32.mxu0 0.0
      %483 = vmatmul.mubr.f32.gmra.mxu0 %v412
      %v484 = vpop.f32.mrf.mxu0
      %v485 = vadd.f32 %v408, %v484
      %v486 = vpop.f32.mrf.mxu0
      %487 = vdwg.mxu0
      %v488 = vld [vmem:[%s397] sm:$0xff]
      %v489 = vld [vmem:[%s397 + $0x8] sm:$0xff]
      %v490 = vld [vmem:[%s397 + $0x10] sm:$0xff]
      %v491 = vld [vmem:[%s397 + $0x18] sm:$0xff]
      %v492 = vld [vmem:[%s397 + $0x20] sm:$0xff]
      %v493 = vld [vmem:[%s397 + $0x28] sm:$0xff]
      %v494 = vld [vmem:[%s397 + $0x30] sm:$0xff]
      %v495 = vld [vmem:[%s397 + $0x38] sm:$0xff]
      %v496 = vld [vmem:[%s397 + $0x40] sm:$0xff]
      %v497 = vld [vmem:[%s397 + $0x48] sm:$0xff]
      %v498 = vld [vmem:[%s397 + $0x50] sm:$0xff]
      %v499 = vld [vmem:[%s397 + $0x58] sm:$0xff]
      %v500 = vld [vmem:[%s397 + $0x60] sm:$0xff]
      %v501 = vld [vmem:[%s397 + $0x68] sm:$0xff]
      %v502 = vld [vmem:[%s397 + $0x70] sm:$0xff]
      %v503 = vld [vmem:[%s397 + $0x78] sm:$0xff]
      %v504 = vld [vmem:[%s4] sm:$0x1f]
      %506 = vset.pattern.permute.xlu0 0
      %507 = vperm.xlu0 %506, %v504
      %v508 = vpop.permute.xlu0 %507
      %510 = vmatprep.subr.mxu0 0.0
      %511 = vmatpush1.msra.mxu0 %v503
      %512 = vmatprep.subr.mxu0 0.0
      %513 = vmatpush1.msra.mxu0 %v502
      %514 = vmatprep.subr.mxu0 0.0
      %515 = vmatpush1.msra.mxu0 %v501
      %516 = vmatprep.subr.mxu0 0.0
      %517 = vmatpush1.msra.mxu0 %v500
      %518 = vmatprep.subr.mxu0 0.0
      %519 = vmatpush1.msra.mxu0 %v499
      %520 = vmatprep.subr.mxu0 0.0
      %521 = vmatpush1.msra.mxu0 %v498
      %522 = vmatprep.subr.mxu0 0.0
      %523 = vmatpush1.msra.mxu0 %v497
      %524 = vmatprep.subr.mxu0 0.0
      %525 = vmatpush1.msra.mxu0 %v496
      %526 = vmatprep.subr.mxu0 0.0
      %527 = vmatpush1.msra.mxu0 %v495
      %528 = vmatprep.subr.mxu0 0.0
      %529 = vmatpush1.msra.mxu0 %v494
      %530 = vmatprep.subr.mxu0 0.0
      %531 = vmatpush1.msra.mxu0 %v493
      %532 = vmatprep.subr.mxu0 0.0
      %533 = vmatpush1.msra.mxu0 %v492
      %534 = vmatprep.subr.mxu0 0.0
      %535 = vmatpush1.msra.mxu0 %v491
      %536 = vmatprep.subr.mxu0 0.0
      %537 = vmatpush1.msra.mxu0 %v490
      %538 = vmatprep.subr.mxu0 0.0
      %539 = vmatpush1.msra.mxu0 %v489
      %540 = vmatprep.subr.mxu0 0.0
      %541 = vmatpush1.msra.mxu0 %v488
      %542 = vmatprep.subr.mxu0 0.0
      %543 = vmatpush2.msra.mxu0 0.0
      %544 = vmatprep.subr.mxu0 0.0
      %545 = vmatpush2.msra.mxu0 0.0
      %546 = vmatprep.subr.mxu0 0.0
      %547 = vmatpush2.msra.mxu0 0.0
      %548 = vmatprep.subr.mxu0 0.0
      %549 = vmatpush2.msra.mxu0 0.0
      %550 = vmatprep.subr.mxu0 0.0
      %551 = vmatpush2.msra.mxu0 0.0
      %552 = vmatprep.subr.mxu0 0.0
      %553 = vmatpush2.msra.mxu0 0.0
      %554 = vmatprep.subr.mxu0 0.0
      %555 = vmatpush2.msra.mxu0 0.0
      %556 = vmatprep.subr.mxu0 0.0
      %557 = vmatpush2.msra.mxu0 0.0
      %558 = vmatprep.subr.mxu0 0.0
      %559 = vmatpush2.msra.mxu0 0.0
      %560 = vmatprep.subr.mxu0 0.0
      %561 = vmatpush2.msra.mxu0 0.0
      %562 = vmatprep.subr.mxu0 0.0
      %563 = vmatpush2.msra.mxu0 0.0
      %564 = vmatprep.subr.mxu0 0.0
      %565 = vmatpush2.msra.mxu0 0.0
      %566 = vmatprep.subr.mxu0 0.0
      %567 = vmatpush2.msra.mxu0 0.0
      %568 = vmatprep.subr.mxu0 0.0
      %569 = vmatpush2.msra.mxu0 0.0
      %570 = vmatprep.subr.mxu0 0.0
      %571 = vmatpush2.msra.mxu0 0.0
      %572 = vmatprep.subr.mxu0 0.0
      %573 = vmatpush2.msra.mxu0 0.0
      %574 = vmatprep.mubr.f32.mxu0 0.0
      %575 = vmatmul.mubr.f32.gmra.mxu0 %v485
      %v576 = vpop.f32.mrf.mxu0
      %v577 = vadd.f32 %v508, %v576
      %v578 = vpop.f32.mrf.mxu0
      %579 = vdwg.mxu0
      %v580 = vld [vmem:[%s5] sm:$0x1f]
      %v581 = vmax.f32 %v577, 0.0
      %v582 = vmin.f32 %v577, 0.0
      %584 = vset.pattern.permute.xlu0 0
      %585 = vperm.xlu0 %584, %v580
      %v586 = vpop.permute.xlu0 %585
      %v588 = vmul.f32 %v586, %v582
      %v589 = vadd.f32 %v581, %v588
      %591 = vrot.lane.b32.xlu0 %v589, 16
      %v592 = vpop.permute.xlu0 %591
      %vm594 = vcmask 130048
      %v595 = vsel %vm594, 0.0, %v592
      %596 = vrot.lane.b32.xlu0 %v589, 112
      %v597 = vpop.permute.xlu0 %596
      %vm599 = vcmask 916480
      %v600 = vsel %vm599, %v597, 0.0
      %v601 = vld [vmem:[%s6] sm:$0x1f]
      %s602 = scalar_lea.vmem %s6, 8
      %v603 = vld [vmem:[%s602] sm:$0x1f]
      %vm604 = vcmask 39936
      %v606 = vsel %vm604, %v603, 0
      %vm608 = vcmask 1044480
      %v609 = vsel %vm608, %v589, 0
      %611 = vmatprep.subr.mxu0 0.0
      %612 = vmatpush1.msra.mxu0 0.0
      %613 = vmatprep.subr.mxu0 0.0
      %614 = vmatpush1.msra.mxu0 0.0
      %615 = vmatprep.subr.mxu0 0.0
      %616 = vmatpush1.msra.mxu0 0.0
      %617 = vmatprep.subr.mxu0 0.0
      %618 = vmatpush1.msra.mxu0 0.0
      %619 = vmatprep.subr.mxu0 0.0
      %620 = vmatpush1.msra.mxu0 0.0
      %621 = vmatprep.subr.mxu0 0.0
      %622 = vmatpush1.msra.mxu0 0.0
      %623 = vmatprep.subr.mxu0 0.0
      %624 = vmatpush1.msra.mxu0 0.0
      %625 = vmatprep.subr.mxu0 0.0
      %626 = vmatpush1.msra.mxu0 0.0
      %627 = vmatprep.subr.mxu0 0.0
      %628 = vmatpush1.msra.mxu0 0.0
      %629 = vmatprep.subr.mxu0 0.0
      %630 = vmatpush1.msra.mxu0 0.0
      %631 = vmatprep.subr.mxu0 0.0
      %632 = vmatpush1.msra.mxu0 0.0
      %633 = vmatprep.subr.mxu0 0.0
      %634 = vmatpush1.msra.mxu0 0.0
      %635 = vmatprep.subr.mxu0 0.0
      %636 = vmatpush1.msra.mxu0 0.0
      %637 = vmatprep.subr.mxu0 0.0
      %638 = vmatpush1.msra.mxu0 0.0
      %639 = vmatprep.subr.mxu0 0.0
      %640 = vmatpush1.msra.mxu0 0.0
      %641 = vmatprep.subr.mxu0 0.0
      %642 = vmatpush1.msra.mxu0 %v609
      %643 = vmatprep.subr.mxu0 0.0
      %644 = vmatpush2.msra.mxu0 0.0
      %645 = vmatprep.subr.mxu0 0.0
      %646 = vmatpush2.msra.mxu0 0.0
      %647 = vmatprep.subr.mxu0 0.0
      %648 = vmatpush2.msra.mxu0 0.0
      %649 = vmatprep.subr.mxu0 0.0
      %650 = vmatpush2.msra.mxu0 0.0
      %651 = vmatprep.subr.mxu0 0.0
      %652 = vmatpush2.msra.mxu0 0.0
      %653 = vmatprep.subr.mxu0 0.0
      %654 = vmatpush2.msra.mxu0 0.0
      %655 = vmatprep.subr.mxu0 0.0
      %656 = vmatpush2.msra.mxu0 0.0
      %657 = vmatprep.subr.mxu0 0.0
      %658 = vmatpush2.msra.mxu0 0.0
      %659 = vmatprep.subr.mxu0 0.0
      %660 = vmatpush2.msra.mxu0 0.0
      %661 = vmatprep.subr.mxu0 0.0
      %662 = vmatpush2.msra.mxu0 0.0
      %663 = vmatprep.subr.mxu0 0.0
      %664 = vmatpush2.msra.mxu0 0.0
      %665 = vmatprep.subr.mxu0 0.0
      %666 = vmatpush2.msra.mxu0 0.0
      %667 = vmatprep.subr.mxu0 0.0
      %668 = vmatpush2.msra.mxu0 0.0
      %669 = vmatprep.subr.mxu0 0.0
      %670 = vmatpush2.msra.mxu0 0.0
      %671 = vmatprep.subr.mxu0 0.0
      %672 = vmatpush2.msra.mxu0 0.0
      %673 = vmatprep.subr.mxu0 0.0
      %674 = vmatpush2.msra.mxu0 0.0
      %675 = vmatprep.mubr.f32.mxu0 0.0
      %676 = vmatmul.mubr.f32.gmra.mxu0 %v606
      %v677 = vpop.f32.mrf.mxu0
      %v678 = vadd.f32 0.0, %v677
      %v679 = vpop.f32.mrf.mxu0
      %680 = vdwg.mxu0
      %v682 = vsel %vm604, %v601, 0
      %v685 = vsel %vm608, %v595, 0
      %687 = vmatprep.subr.mxu0 0.0
      %688 = vmatpush1.msra.mxu0 0.0
      %689 = vmatprep.subr.mxu0 0.0
      %690 = vmatpush1.msra.mxu0 0.0
      %691 = vmatprep.subr.mxu0 0.0
      %692 = vmatpush1.msra.mxu0 0.0
      %693 = vmatprep.subr.mxu0 0.0
      %694 = vmatpush1.msra.mxu0 0.0
      %695 = vmatprep.subr.mxu0 0.0
      %696 = vmatpush1.msra.mxu0 0.0
      %697 = vmatprep.subr.mxu0 0.0
      %698 = vmatpush1.msra.mxu0 0.0
      %699 = vmatprep.subr.mxu0 0.0
      %700 = vmatpush1.msra.mxu0 0.0
      %701 = vmatprep.subr.mxu0 0.0
      %702 = vmatpush1.msra.mxu0 0.0
      %703 = vmatprep.subr.mxu0 0.0
      %704 = vmatpush1.msra.mxu0 0.0
      %705 = vmatprep.subr.mxu0 0.0
      %706 = vmatpush1.msra.mxu0 0.0
      %707 = vmatprep.subr.mxu0 0.0
      %708 = vmatpush1.msra.mxu0 0.0
      %709 = vmatprep.subr.mxu0 0.0
      %710 = vmatpush1.msra.mxu0 0.0
      %711 = vmatprep.subr.mxu0 0.0
      %712 = vmatpush1.msra.mxu0 0.0
      %713 = vmatprep.subr.mxu0 0.0
      %714 = vmatpush1.msra.mxu0 0.0
      %715 = vmatprep.subr.mxu0 0.0
      %716 = vmatpush1.msra.mxu0 0.0
      %717 = vmatprep.subr.mxu0 0.0
      %718 = vmatpush1.msra.mxu0 %v685
      %719 = vmatprep.subr.mxu0 0.0
      %720 = vmatpush2.msra.mxu0 0.0
      %721 = vmatprep.subr.mxu0 0.0
      %722 = vmatpush2.msra.mxu0 0.0
      %723 = vmatprep.subr.mxu0 0.0
      %724 = vmatpush2.msra.mxu0 0.0
      %725 = vmatprep.subr.mxu0 0.0
      %726 = vmatpush2.msra.mxu0 0.0
      %727 = vmatprep.subr.mxu0 0.0
      %728 = vmatpush2.msra.mxu0 0.0
      %729 = vmatprep.subr.mxu0 0.0
      %730 = vmatpush2.msra.mxu0 0.0
      %731 = vmatprep.subr.mxu0 0.0
      %732 = vmatpush2.msra.mxu0 0.0
      %733 = vmatprep.subr.mxu0 0.0
      %734 = vmatpush2.msra.mxu0 0.0
      %735 = vmatprep.subr.mxu0 0.0
      %736 = vmatpush2.msra.mxu0 0.0
      %737 = vmatprep.subr.mxu0 0.0
      %738 = vmatpush2.msra.mxu0 0.0
      %739 = vmatprep.subr.mxu0 0.0
      %740 = vmatpush2.msra.mxu0 0.0
      %741 = vmatprep.subr.mxu0 0.0
      %742 = vmatpush2.msra.mxu0 0.0
      %743 = vmatprep.subr.mxu0 0.0
      %744 = vmatpush2.msra.mxu0 0.0
      %745 = vmatprep.subr.mxu0 0.0
      %746 = vmatpush2.msra.mxu0 0.0
      %747 = vmatprep.subr.mxu0 0.0
      %748 = vmatpush2.msra.mxu0 0.0
      %749 = vmatprep.subr.mxu0 0.0
      %750 = vmatpush2.msra.mxu0 0.0
      %751 = vmatprep.mubr.f32.mxu0 0.0
      %752 = vmatmul.mubr.f32.gmra.mxu0 %v682
      %v753 = vpop.f32.mrf.mxu0
      %v754 = vadd.f32 %v678, %v753
      %v755 = vpop.f32.mrf.mxu0
      %756 = vdwg.mxu0
      %s757 = scalar_lea.vmem %s6, 16
      %v758 = vld [vmem:[%s757] sm:$0x1f]
      %v760 = vsel %vm604, %v758, 0
      %v763 = vsel %vm608, %v600, 0
      %765 = vmatprep.subr.mxu0 0.0
      %766 = vmatpush1.msra.mxu0 0.0
      %767 = vmatprep.subr.mxu0 0.0
      %768 = vmatpush1.msra.mxu0 0.0
      %769 = vmatprep.subr.mxu0 0.0
      %770 = vmatpush1.msra.mxu0 0.0
      %771 = vmatprep.subr.mxu0 0.0
      %772 = vmatpush1.msra.mxu0 0.0
      %773 = vmatprep.subr.mxu0 0.0
      %774 = vmatpush1.msra.mxu0 0.0
      %775 = vmatprep.subr.mxu0 0.0
      %776 = vmatpush1.msra.mxu0 0.0
      %777 = vmatprep.subr.mxu0 0.0
      %778 = vmatpush1.msra.mxu0 0.0
      %779 = vmatprep.subr.mxu0 0.0
      %780 = vmatpush1.msra.mxu0 0.0
      %781 = vmatprep.subr.mxu0 0.0
      %782 = vmatpush1.msra.mxu0 0.0
      %783 = vmatprep.subr.mxu0 0.0
      %784 = vmatpush1.msra.mxu0 0.0
      %785 = vmatprep.subr.mxu0 0.0
      %786 = vmatpush1.msra.mxu0 0.0
      %787 = vmatprep.subr.mxu0 0.0
      %788 = vmatpush1.msra.mxu0 0.0
      %789 = vmatprep.subr.mxu0 0.0
      %790 = vmatpush1.msra.mxu0 0.0
      %791 = vmatprep.subr.mxu0 0.0
      %792 = vmatpush1.msra.mxu0 0.0
      %793 = vmatprep.subr.mxu0 0.0
      %794 = vmatpush1.msra.mxu0 0.0
      %795 = vmatprep.subr.mxu0 0.0
      %796 = vmatpush1.msra.mxu0 %v763
      %797 = vmatprep.subr.mxu0 0.0
      %798 = vmatpush2.msra.mxu0 0.0
      %799 = vmatprep.subr.mxu0 0.0
      %800 = vmatpush2.msra.mxu0 0.0
      %801 = vmatprep.subr.mxu0 0.0
      %802 = vmatpush2.msra.mxu0 0.0
      %803 = vmatprep.subr.mxu0 0.0
      %804 = vmatpush2.msra.mxu0 0.0
      %805 = vmatprep.subr.mxu0 0.0
      %806 = vmatpush2.msra.mxu0 0.0
      %807 = vmatprep.subr.mxu0 0.0
      %808 = vmatpush2.msra.mxu0 0.0
      %809 = vmatprep.subr.mxu0 0.0
      %810 = vmatpush2.msra.mxu0 0.0
      %811 = vmatprep.subr.mxu0 0.0
      %812 = vmatpush2.msra.mxu0 0.0
      %813 = vmatprep.subr.mxu0 0.0
      %814 = vmatpush2.msra.mxu0 0.0
      %815 = vmatprep.subr.mxu0 0.0
      %816 = vmatpush2.msra.mxu0 0.0
      %817 = vmatprep.subr.mxu0 0.0
      %818 = vmatpush2.msra.mxu0 0.0
      %819 = vmatprep.subr.mxu0 0.0
      %820 = vmatpush2.msra.mxu0 0.0
      %821 = vmatprep.subr.mxu0 0.0
      %822 = vmatpush2.msra.mxu0 0.0
      %823 = vmatprep.subr.mxu0 0.0
      %824 = vmatpush2.msra.mxu0 0.0
      %825 = vmatprep.subr.mxu0 0.0
      %826 = vmatpush2.msra.mxu0 0.0
      %827 = vmatprep.subr.mxu0 0.0
      %828 = vmatpush2.msra.mxu0 0.0
      %829 = vmatprep.mubr.f32.mxu0 0.0
      %830 = vmatmul.mubr.f32.gmra.mxu0 %v760
      %v831 = vpop.f32.mrf.mxu0
      %v832 = vadd.f32 0.0, %v831
      %v833 = vpop.f32.mrf.mxu0
      %834 = vdwg.mxu0
      %v835 = vadd.f32 %v754, %v832
      %v836 = vld [vmem:[%s7] sm:$0x1f]
      %838 = vset.pattern.permute.xlu0 0
      %839 = vperm.xlu0 %838, %v836
      %v840 = vpop.permute.xlu0 %839
      %v842 = vadd.f32 %v835, %v840
      %v843 = vld [vmem:[%s8] sm:$0x1f]
      %v844 = vld [vmem:[%s9] sm:$0x1f]
      %846 = vset.pattern.permute.xlu0 0
      %847 = vperm.xlu0 %846, %v844
      %v848 = vpop.permute.xlu0 %847
      %v851 = vsel %vm410, %v843, 0
      %853 = vmatprep.subr.mxu0 0.0
      %854 = vmatpush1.msra.mxu0 0.0
      %855 = vmatprep.subr.mxu0 0.0
      %856 = vmatpush1.msra.mxu0 0.0
      %857 = vmatprep.subr.mxu0 0.0
      %858 = vmatpush1.msra.mxu0 0.0
      %859 = vmatprep.subr.mxu0 0.0
      %860 = vmatpush1.msra.mxu0 0.0
      %861 = vmatprep.subr.mxu0 0.0
      %862 = vmatpush1.msra.mxu0 0.0
      %863 = vmatprep.subr.mxu0 0.0
      %864 = vmatpush1.msra.mxu0 0.0
      %865 = vmatprep.subr.mxu0 0.0
      %866 = vmatpush1.msra.mxu0 0.0
      %867 = vmatprep.subr.mxu0 0.0
      %868 = vmatpush1.msra.mxu0 0.0
      %869 = vmatprep.subr.mxu0 0.0
      %870 = vmatpush1.msra.mxu0 0.0
      %871 = vmatprep.subr.mxu0 0.0
      %872 = vmatpush1.msra.mxu0 0.0
      %873 = vmatprep.subr.mxu0 0.0
      %874 = vmatpush1.msra.mxu0 0.0
      %875 = vmatprep.subr.mxu0 0.0
      %876 = vmatpush1.msra.mxu0 0.0
      %877 = vmatprep.subr.mxu0 0.0
      %878 = vmatpush1.msra.mxu0 0.0
      %879 = vmatprep.subr.mxu0 0.0
      %880 = vmatpush1.msra.mxu0 0.0
      %881 = vmatprep.subr.mxu0 0.0
      %882 = vmatpush1.msra.mxu0 0.0
      %883 = vmatprep.subr.mxu0 0.0
      %884 = vmatpush1.msra.mxu0 %v416
      %885 = vmatprep.subr.mxu0 0.0
      %886 = vmatpush2.msra.mxu0 0.0
      %887 = vmatprep.subr.mxu0 0.0
      %888 = vmatpush2.msra.mxu0 0.0
      %889 = vmatprep.subr.mxu0 0.0
      %890 = vmatpush2.msra.mxu0 0.0
      %891 = vmatprep.subr.mxu0 0.0
      %892 = vmatpush2.msra.mxu0 0.0
      %893 = vmatprep.subr.mxu0 0.0
      %894 = vmatpush2.msra.mxu0 0.0
      %895 = vmatprep.subr.mxu0 0.0
      %896 = vmatpush2.msra.mxu0 0.0
      %897 = vmatprep.subr.mxu0 0.0
      %898 = vmatpush2.msra.mxu0 0.0
      %899 = vmatprep.subr.mxu0 0.0
      %900 = vmatpush2.msra.mxu0 0.0
      %901 = vmatprep.subr.mxu0 0.0
      %902 = vmatpush2.msra.mxu0 0.0
      %903 = vmatprep.subr.mxu0 0.0
      %904 = vmatpush2.msra.mxu0 0.0
      %905 = vmatprep.subr.mxu0 0.0
      %906 = vmatpush2.msra.mxu0 0.0
      %907 = vmatprep.subr.mxu0 0.0
      %908 = vmatpush2.msra.mxu0 0.0
      %909 = vmatprep.subr.mxu0 0.0
      %910 = vmatpush2.msra.mxu0 0.0
      %911 = vmatprep.subr.mxu0 0.0
      %912 = vmatpush2.msra.mxu0 0.0
      %913 = vmatprep.subr.mxu0 0.0
      %914 = vmatpush2.msra.mxu0 0.0
      %915 = vmatprep.subr.mxu0 0.0
      %916 = vmatpush2.msra.mxu0 0.0
      %917 = vmatprep.mubr.f32.mxu0 0.0
      %918 = vmatmul.mubr.f32.gmra.mxu0 %v851
      %v919 = vpop.f32.mrf.mxu0
      %v920 = vadd.f32 %v848, %v919
      %v921 = vpop.f32.mrf.mxu0
      %922 = vdwg.mxu0
      %v923 = vadd.f32 %v842, %v920
      %v924 = vld [vmem:[%s10] sm:$0x1f]
      %v925 = vmax.f32 %v923, 0.0
      %v926 = vmin.f32 %v923, 0.0
      %928 = vset.pattern.permute.xlu0 0
      %929 = vperm.xlu0 %928, %v924
      %v930 = vpop.permute.xlu0 %929
      %v932 = vmul.f32 %v930, %v926
      %v933 = vadd.f32 %v925, %v932
      %934 = vst [vmem:[%s401] sm:$0x1f] %v933
      %p935 = scmp.lt.s32.totalorder %s22, 1
      %s936 = scalar_select %p935, %s22, 1
      %s937 = smul.addr %s936, 8
      %s938 = scalar_lea.vmem %s11, %s937
      // Predicated region
      $region65: #{social_stgcnn_adaptive_forward.2} parent=63 // pred_check
        %p939 = pneg %p281
      $region66: #{social_stgcnn_adaptive_forward.2} parent=63 // pred_check_branch
        %941 = sbr.rel (%p939) target = $region68
      $region67: #{social_stgcnn_adaptive_forward.2} parent=63 // pred_region
        _
      $region68: #{social_stgcnn_adaptive_forward.2} parent=63 // pred_fallthru
        _
    $region64: #{social_stgcnn_adaptive_forward.2} parent=5 // pred_fallthru
      _
    %p942 = scmp.le.s32.totalorder 2, %s17
    // Predicated region
    $region69: #{social_stgcnn_adaptive_forward.2} parent=5 // pred_check
      %p943 = pneg %p942
    $region70: #{social_stgcnn_adaptive_forward.2} parent=5 // pred_check_branch
      %945 = sbr.rel (%p943) target = $region72
    $region71: #{social_stgcnn_adaptive_forward.2} parent=5 // pred_region
      %s946 = ssub.s32 %s17, 2
      // Predicated region
      $region73: #{social_stgcnn_adaptive_forward.2} parent=71 // pred_check
        %p947 = pneg %p287
      $region74: #{social_stgcnn_adaptive_forward.2} parent=71 // pred_check_branch
        %949 = sbr.rel (%p947) target = $region76
      $region75: #{social_stgcnn_adaptive_forward.2} parent=71 // pred_region
        %p950 = scmp.lt.s32.totalorder %s23, 1
        %s951 = scalar_select %p950, %s23, 1
        %s952 = smul.addr %s951, 8
        %s953 = scalar_lea.vmem %s11, %s952
      $region76: #{social_stgcnn_adaptive_forward.2} parent=71 // pred_fallthru
        _
    $region72: #{social_stgcnn_adaptive_forward.2} parent=5 // pred_fallthru
      _
  $region6: #{social_stgcnn_adaptive_forward.2} parent=0 // loop_footer
    %s21 = sadd.s32 1, %s17
  $region7: #{social_stgcnn_adaptive_forward.2} parent=0 // loop_footer_branch
    %16 = sbr.rel target = $region3
  $region8: #{social_stgcnn_adaptive_forward.2} parent=0 // loop_exit
    _

</llo_original>
